<compile_context>
chip_gen: v6e
topology: v6e:2x2x1
jax: 0.10.0
libtpu: 0.0.40
codegen_flags: <defaults>
</compile_context>

<pallas_src>
import functools

import jax
import jax.numpy as jnp
import numpy as np
from jax.experimental import pallas as pl
from jax.experimental.pallas import tpu as pltpu

EPS = 1e-5  # nn.BatchNorm2d default eps


def _round_up(x, m):
    return ((x + m - 1) // m) * m


# ---------------------------------------------------------------------------
# Kernels
# ---------------------------------------------------------------------------
def _conv_stats_kernel(x_ref, w_ref, y_ref, sum_ref, sq_ref):
    """y = x @ w (MXU); accumulate f32 per-channel sum / sum-of-squares of y."""
    @pl.when(pl.program_id(0) == 0)
    def _():
        sum_ref[...] = jnp.zeros_like(sum_ref)
        sq_ref[...] = jnp.zeros_like(sq_ref)

    y = jnp.dot(x_ref[...], w_ref[...], preferred_element_type=jnp.float32)
    y_ref[...] = y.astype(y_ref.dtype)
    # Per-channel reductions on VPU/XLU slots (the MXU slot is the conv's
    # bottleneck; the previous ones@y row-sums pushed y through the MXU twice).
    sum_ref[...] += jnp.sum(y, axis=0, keepdims=True)
    sq_ref[...] += jnp.sum(y * y, axis=0, keepdims=True)


def _bn_relu_conv_stats_kernel(y_prev_ref, scale_ref, shift_ref, w_ref,
                               y_ref, sum_ref, sq_ref, *, tm, m_true,
                               mask_pad):
    """t = relu(BN_prev(y_prev)) in f32; y = t @ w; accumulate f32 stats of y."""
    i = pl.program_id(0)

    @pl.when(i == 0)
    def _():
        sum_ref[...] = jnp.zeros_like(sum_ref)
        sq_ref[...] = jnp.zeros_like(sq_ref)

    # Folded BatchNorm FMA + ReLU, kept in f32 (v5e VPU has no bf16 path).
    t = jnp.maximum(
        y_prev_ref[...].astype(jnp.float32) * scale_ref[...] + shift_ref[...],
        0.0)
    if mask_pad:  # statically skipped when M % TM == 0
        # Zero the M-padding rows so they cannot pollute this stage's stats.
        row = i * tm + jax.lax.broadcasted_iota(jnp.int32, t.shape, 0)
        t = jnp.where(row < m_true, t, 0.0)

    y = jnp.dot(t.astype(w_ref.dtype), w_ref[...],
                preferred_element_type=jnp.float32)
    y_ref[...] = y.astype(y_ref.dtype)
    sum_ref[...] += jnp.sum(y, axis=0, keepdims=True)
    sq_ref[...] += jnp.sum(y * y, axis=0, keepdims=True)


def _residual_add_kernel(y1_ref, y3_ref, s1_ref, b1_ref, s3_ref, b3_ref,
                         o_ref):
    """out = relu(BN3(y3) + BN1(y1))   (shortcut == BN1(conv(x)) == BN1(y1))."""
    shortcut = y1_ref[...].astype(jnp.float32) * s1_ref[...] + b1_ref[...]
    residual = y3_ref[...].astype(jnp.float32) * s3_ref[...] + b3_ref[...]
    o_ref[...] = jnp.maximum(residual + shortcut, 0.0).astype(o_ref.dtype)


# ---------------------------------------------------------------------------
# Wrapper helpers
# ---------------------------------------------------------------------------
def _vmem_capacity_bytes():
    try:
        return int(pltpu.get_tpu_info().vmem_capacity_bytes)
    except Exception:
        return 64 * 1024 * 1024  # conservative: v7x per-TensorCore VMEM


def _pick_tm(m, c_pad, compute_itemsize, vmem_budget):
    """Largest M-tile that fits the VMEM budget (pass 4 is the heaviest)."""
    # Pass 4: two double-buffered compute-dtype inputs + one double-buffered
    # f32 output per (TM, C_pad) row block.
    per_row_bytes = 2 * (2 * compute_itemsize + 4) * c_pad
    # Stats passes additionally keep the (C_pad, C_pad) weight resident
    # (double-buffered by the default pipeline even though its block index is
    # constant) -- reserve for it so v7x's 64 MiB VMEM cannot OOM.
    weight_bytes = 2 * c_pad * c_pad * compute_itemsize
    tm = (vmem_budget - weight_bytes) // per_row_bytes
    tm = max(256, min(tm, 2048))           # streaming sweet spot
    tm = min(tm, _round_up(m, 8))          # never exceed the padded problem
    return max(8, (tm // 8) * 8)


def _bn_fold(sum_, sq_, gamma_row, beta_row, m):
    """Fold batch stats + affine params into a single scale/shift FMA (f32)."""
    # TODO(synk): single-pass E[y^2]-E[y]^2 is cancellation-prone for
    # activations with very large means; acceptable here (f32 accumulators).
    mu = sum_ / m
    var = jnp.maximum(sq_ / m - mu * mu, 0.0)
    scale = gamma_row * jax.lax.rsqrt(var + EPS)
    shift = beta_row - mu * scale
    return scale, shift


# ---------------------------------------------------------------------------
# Forward
# ---------------------------------------------------------------------------
@functools.partial(jax.jit, static_argnames=("compute_dtype",))
def bottleneck_forward(x_nchw, conv_w, conv_b, gamma, beta, *,
                       compute_dtype=jnp.bfloat16):
    """x_nchw: (N, C, H, W) f32; conv_w: (C, C, 1, 1); conv_b/gamma/beta: (C,)."""
    del conv_b  # BN with batch statistics cancels the per-channel conv bias.

    N, C, H, W = x_nchw.shape
    M = N * H * W
    C_pad = max(128, _round_up(C, 128))            # lane-dense channels
    itemsize = jnp.dtype(compute_dtype).itemsize

    vmem_cap = _vmem_capacity_bytes()
    vmem_limit = int(min(vmem_cap * 3 // 4, 96 * 1024 * 1024))
    TM = _pick_tm(M, C_pad, itemsize, vmem_limit // 2)
    num_tiles = pl.cdiv(M, TM)
    M_pad = num_tiles * TM
    mask_pad = (M % TM) != 0

    # NCHW -> NHWC -> (M, C), zero-padded to (M_pad, C_pad), cast for the MXU.
    # TODO(synk): accept/produce NHWC directly to drop these wrapper-side
    # transposes (each is a full extra HBM read+write of an M x C tensor).
    x_flat = jnp.transpose(x_nchw, (0, 2, 3, 1)).reshape(M, C)
    x_p = jnp.pad(x_flat, ((0, M_pad - M), (0, C_pad - C))).astype(compute_dtype)
    # PyTorch conv weight is (C_out, C_in, 1, 1); transpose so y = x @ w.
    w_t = jnp.transpose(conv_w[:, :, 0, 0], (1, 0))
    w_p = jnp.pad(w_t, ((0, C_pad - C), (0, C_pad - C))).astype(compute_dtype)
    gamma_row = jnp.pad(gamma, (0, C_pad - C)).reshape(1, C_pad)
    beta_row = jnp.pad(beta, (0, C_pad - C)).reshape(1, C_pad)

    row_spec = pl.BlockSpec((TM, C_pad), lambda i: (i, 0))
    vec_spec = pl.BlockSpec((1, C_pad), lambda i: (0, 0))
    # TODO(synk): at real ResNet widths (C_pad ~ 2048) on v7x, single-buffer
    # this constant-index weight block (or tile its output-channel axis) so
    # the double-buffered copy does not eat half of the 64 MiB VMEM.
    w_spec = pl.BlockSpec((C_pad, C_pad), lambda i: (0, 0))

    y_shape = jax.ShapeDtypeStruct((M_pad, C_pad), compute_dtype)  # bf16 in HBM
    vec_shape = jax.ShapeDtypeStruct((1, C_pad), jnp.float32)      # f32 stats

    reduce_params = pltpu.CompilerParams(
        dimension_semantics=("arbitrary",),        # stats accumulate over M
        vmem_limit_bytes=vmem_limit)
    parallel_params = pltpu.CompilerParams(
        dimension_semantics=("parallel",),         # megacore-shardable
        vmem_limit_bytes=vmem_limit)
    # TODO(synk): on v7x, split the stats passes over a leading size-2
    # "parallel" grid axis (per-core partial sums combined in _bn_fold) so
    # both TensorCores are active; single-axis grid kept here for clarity.

    # Pass 1: y1 = x @ w, per-channel stats of y1.
    y1, s1, q1 = pl.pallas_call(
        _conv_stats_kernel,
        grid=(num_tiles,),
        in_specs=[row_spec, w_spec],
        out_specs=[row_spec, vec_spec, vec_spec],
        out_shape=[y_shape, vec_shape, vec_shape],
        compiler_params=reduce_params,
    )(x_p, w_p)
    scale1, shift1 = _bn_fold(s1, q1, gamma_row, beta_row, M)

    # Passes 2 & 3: y_next = relu(BN_prev(y_prev)) @ w, stats of y_next.
    # TODO(synk): could fuse passes 1-3 into one pallas_call (grid=(3, tiles))
    # with an in-kernel BN fold to drop two launches; kept separate for clarity.
    stage_call = pl.pallas_call(
        functools.partial(_bn_relu_conv_stats_kernel, tm=TM, m_true=M,
                          mask_pad=mask_pad),
        grid=(num_tiles,),
        in_specs=[row_spec, vec_spec, vec_spec, w_spec],
        out_specs=[row_spec, vec_spec, vec_spec],
        out_shape=[y_shape, vec_shape, vec_shape],
        compiler_params=reduce_params,
    )
    y2, s2, q2 = stage_call(y1, scale1, shift1, w_p)
    scale2, shift2 = _bn_fold(s2, q2, gamma_row, beta_row, M)
    y3, s3, q3 = stage_call(y2, scale2, shift2, w_p)
    scale3, shift3 = _bn_fold(s3, q3, gamma_row, beta_row, M)

    # Pass 4: out = relu(BN3(y3) + BN1(y1)), f32 output.
    out_p = pl.pallas_call(
        _residual_add_kernel,
        grid=(num_tiles,),
        in_specs=[row_spec, row_spec, vec_spec, vec_spec, vec_spec, vec_spec],
        out_specs=row_spec,
        out_shape=jax.ShapeDtypeStruct((M_pad, C_pad), jnp.float32),
        compiler_params=parallel_params,
    )(y1, y3, scale1, shift1, scale3, shift3)

    out = out_p[:M, :C].reshape(N, H, W, C)
    return jnp.transpose(out, (0, 3, 1, 2))        # back to NCHW


# ---------------------------------------------------------------------------
# Pure-JAX reference (keeps the conv bias — proves BN cancels it exactly)
# ---------------------------------------------------------------------------
def bottleneck_reference(x_nchw, conv_w, conv_b, gamma, beta):
    N, C, H, W = x_nchw.shape
    x = jnp.transpose(x_nchw, (0, 2, 3, 1)).reshape(N * H * W, C)
    w_t = jnp.transpose(conv_w[:, :, 0, 0], (1, 0))

    def conv(t):
        return t @ w_t + conv_b[None, :]

    def bn(t):
        mu = jnp.mean(t, axis=0, keepdims=True)
        var = jnp.mean(jnp.square(t - mu), axis=0, keepdims=True)
        return (t - mu) / jnp.sqrt(var + EPS) * gamma[None, :] + beta[None, :]

    relu = lambda t: jnp.maximum(t, 0.0)
    residual = bn(conv(relu(bn(conv(relu(bn(conv(x))))))))
    shortcut = bn(conv(x))
    out = relu(residual + shortcut)
    return jnp.transpose(out.reshape(N, H, W, C), (0, 3, 1, 2))


if __name__ == "__main__":
    out_channels = 4
    C = out_channels * 4          # shared conv / BN width (see TODO(synk))
    N, H, W = 2, 16, 16

    key = jax.random.PRNGKey(0)
    k1, k2, k3, k4, k5 = jax.random.split(key, 5)
    x = jax.random.normal(k1, (N, C, H, W), dtype=jnp.float32)
    conv_w = 0.1 * jax.random.normal(k2, (C, C, 1, 1), dtype=jnp.float32)
    conv_b = 0.1 * jax.random.normal(k3, (C,), dtype=jnp.float32)
    gamma = 1.0 + 0.1 * jax.random.normal(k4, (C,), dtype=jnp.float32)
    beta = 0.1 * jax.random.normal(k5, (C,), dtype=jnp.float32)

    ref = bottleneck_reference(x, conv_w, conv_b, gamma, beta)

    # f32 compute path: tight semantic check of the kernel chain.
    out_f32 = jax.block_until_ready(
        bottleneck_forward(x, conv_w, conv_b, gamma, beta,
                           compute_dtype=jnp.float32))
    np.testing.assert_allclose(np.asarray(out_f32), np.asarray(ref),
                               rtol=2e-4, atol=2e-4)

    # bf16 MXU-operand path (default / fast): looser tolerance (bf16 operands
    # and bf16 HBM intermediates; stats and BN fold remain f32).
    out_bf16 = jax.block_until_ready(
        bottleneck_forward(x, conv_w, conv_b, gamma, beta))
    np.testing.assert_allclose(np.asarray(out_bf16), np.asarray(ref),
                               rtol=5e-2, atol=5e-2)

    print("KERNEL_OK")
</pallas_src>

<mosaic_0001>
module attributes {stable_mosaic.version = 11 : i64} {
  func.func @_conv_stats_kernel(%arg0: i32, %arg1: memref<512x128xf32, #tpu.memory_space<vmem>>, %arg2: memref<128x128xf32, #tpu.memory_space<vmem>>, %arg3: memref<512x128xf32, #tpu.memory_space<vmem>>, %arg4: memref<1x128xf32, #tpu.memory_space<vmem>>, %arg5: memref<1x128xf32, #tpu.memory_space<vmem>>) attributes {dimension_semantics = [#tpu.dimension_semantics<arbitrary>], iteration_bounds = array<i64: 1>, scalar_prefetch = 0 : i64, scratch_operands = 0 : i64, tpu.core_type = #tpu.core_type<tc>, window_params = [{transform_indices = @transform_0, window_bounds = array<i64: 512, 128>}, {pipeline_mode = #tpu.pipeline_mode<synchronous>, transform_indices = @transform_1, window_bounds = array<i64: 128, 128>}, {transform_indices = @transform_2, window_bounds = array<i64: 512, 128>}, {pipeline_mode = #tpu.pipeline_mode<synchronous>, transform_indices = @transform_3, window_bounds = array<i64: 1, 128>}, {pipeline_mode = #tpu.pipeline_mode<synchronous>, transform_indices = @transform_4, window_bounds = array<i64: 1, 128>}]} {
    %c0_i32 = arith.constant 0 : i32
    %0 = arith.cmpi eq, %arg0, %c0_i32 : i32
    %1 = arith.extui %0 : i1 to i32
    %c0_i32_0 = arith.constant 0 : i32
    %2 = arith.cmpi ne, %1, %c0_i32_0 : i32
    scf.if %2 {
      %cst_16 = arith.constant 0.000000e+00 : f32
      %18 = vector.broadcast %cst_16 : f32 to vector<1x128xf32>
      %c0_17 = arith.constant 0 : index
      %c0_18 = arith.constant 0 : index
      %19 = vector.load %arg4[%c0_17, %c0_18] : memref<1x128xf32, #tpu.memory_space<vmem>>, vector<1x128xf32>
      tpu.vector_store %arg4[%c0_17, %c0_18], %18 {strides = array<i32>} : memref<1x128xf32, #tpu.memory_space<vmem>>, vector<1x128xf32>,
      %cst_19 = arith.constant 0.000000e+00 : f32
      %20 = vector.broadcast %cst_19 : f32 to vector<1x128xf32>
      %c0_20 = arith.constant 0 : index
      %c0_21 = arith.constant 0 : index
      %21 = vector.load %arg5[%c0_20, %c0_21] : memref<1x128xf32, #tpu.memory_space<vmem>>, vector<1x128xf32>
      tpu.vector_store %arg5[%c0_20, %c0_21], %20 {strides = array<i32>} : memref<1x128xf32, #tpu.memory_space<vmem>>, vector<1x128xf32>,
    } else {
    }
    %c0 = arith.constant 0 : index
    %c0_1 = arith.constant 0 : index
    %3 = vector.load %arg1[%c0, %c0_1] : memref<512x128xf32, #tpu.memory_space<vmem>>, vector<512x128xf32>
    %c0_2 = arith.constant 0 : index
    %c0_3 = arith.constant 0 : index
    %4 = vector.load %arg2[%c0_2, %c0_3] : memref<128x128xf32, #tpu.memory_space<vmem>>, vector<128x128xf32>
    %cst = arith.constant dense<0.000000e+00> : vector<512x128xf32>
    %5 = tpu.matmul %3, %4, %cst {dimension_numbers = #tpu.dot_dimension_numbers<[1], [0], [0], [1], [0, 0, 1, 1], [], []>} : vector<512x128xf32>, vector<128x128xf32>, vector<512x128xf32> -> vector<512x128xf32>
    %c0_4 = arith.constant 0 : index
    %c0_5 = arith.constant 0 : index
    %6 = vector.load %arg3[%c0_4, %c0_5] : memref<512x128xf32, #tpu.memory_space<vmem>>, vector<512x128xf32>
    tpu.vector_store %arg3[%c0_4, %c0_5], %5 {strides = array<i32>} : memref<512x128xf32, #tpu.memory_space<vmem>>, vector<512x128xf32>,
    %c0_6 = arith.constant 0 : index
    %c0_7 = arith.constant 0 : index
    %7 = vector.load %arg4[%c0_6, %c0_7] : memref<1x128xf32, #tpu.memory_space<vmem>>, vector<1x128xf32>
    %cst_8 = arith.constant dense<0.000000e+00> : vector<128xf32>
    %8 = vector.multi_reduction <add>, %5, %cst_8 [0] : vector<512x128xf32> to vector<128xf32>
    %9 = vector.shape_cast %8 : vector<128xf32> to vector<1x128xf32>
    %10 = arith.addf %7, %9 : vector<1x128xf32>
    %c0_9 = arith.constant 0 : index
    %c0_10 = arith.constant 0 : index
    %11 = vector.load %arg4[%c0_9, %c0_10] : memref<1x128xf32, #tpu.memory_space<vmem>>, vector<1x128xf32>
    tpu.vector_store %arg4[%c0_9, %c0_10], %10 {strides = array<i32>} : memref<1x128xf32, #tpu.memory_space<vmem>>, vector<1x128xf32>,
    %c0_11 = arith.constant 0 : index
    %c0_12 = arith.constant 0 : index
    %12 = vector.load %arg5[%c0_11, %c0_12] : memref<1x128xf32, #tpu.memory_space<vmem>>, vector<1x128xf32>
    %13 = arith.mulf %5, %5 : vector<512x128xf32>
    %cst_13 = arith.constant dense<0.000000e+00> : vector<128xf32>
    %14 = vector.multi_reduction <add>, %13, %cst_13 [0] : vector<512x128xf32> to vector<128xf32>
    %15 = vector.shape_cast %14 : vector<128xf32> to vector<1x128xf32>
    %16 = arith.addf %12, %15 : vector<1x128xf32>
    %c0_14 = arith.constant 0 : index
    %c0_15 = arith.constant 0 : index
    %17 = vector.load %arg5[%c0_14, %c0_15] : memref<1x128xf32, #tpu.memory_space<vmem>>, vector<1x128xf32>
    tpu.vector_store %arg5[%c0_14, %c0_15], %16 {strides = array<i32>} : memref<1x128xf32, #tpu.memory_space<vmem>>, vector<1x128xf32>,
    return
  }
  func.func @transform_0(%arg0: i32) -> (i32, i32) {
    %c0_i32 = arith.constant 0 : i32
    %c0_i32_0 = arith.constant 0 : i32
    return %arg0, %c0_i32 : i32, i32
  }
  func.func @transform_1(%arg0: i32) -> (i32, i32) {
    %c0_i32 = arith.constant 0 : i32
    %c0_i32_0 = arith.constant 0 : i32
    %c0_i32_1 = arith.constant 0 : i32
    return %c0_i32, %c0_i32_0 : i32, i32
  }
  func.func @transform_2(%arg0: i32) -> (i32, i32) {
    %c0_i32 = arith.constant 0 : i32
    %c0_i32_0 = arith.constant 0 : i32
    return %arg0, %c0_i32 : i32, i32
  }
  func.func @transform_3(%arg0: i32) -> (i32, i32) {
    %c0_i32 = arith.constant 0 : i32
    %c0_i32_0 = arith.constant 0 : i32
    %c0_i32_1 = arith.constant 0 : i32
    return %c0_i32, %c0_i32_0 : i32, i32
  }
  func.func @transform_4(%arg0: i32) -> (i32, i32) {
    %c0_i32 = arith.constant 0 : i32
    %c0_i32_0 = arith.constant 0 : i32
    %c0_i32_1 = arith.constant 0 : i32
    return %c0_i32, %c0_i32_0 : i32, i32
  }
}

module attributes {stable_mosaic.version = 11 : i64} {
  func.func @_residual_add_kernel(%arg0: i32, %arg1: memref<512x128xf32, #tpu.memory_space<vmem>>, %arg2: memref<512x128xf32, #tpu.memory_space<vmem>>, %arg3: memref<1x128xf32, #tpu.memory_space<vmem>>, %arg4: memref<1x128xf32, #tpu.memory_space<vmem>>, %arg5: memref<1x128xf32, #tpu.memory_space<vmem>>, %arg6: memref<1x128xf32, #tpu.memory_space<vmem>>, %arg7: memref<512x128xf32, #tpu.memory_space<vmem>>) attributes {dimension_semantics = [#tpu.dimension_semantics<parallel>], iteration_bounds = array<i64: 1>, scalar_prefetch = 0 : i64, scratch_operands = 0 : i64, tpu.core_type = #tpu.core_type<tc>, window_params = [{transform_indices = @transform_0, window_bounds = array<i64: 512, 128>}, {transform_indices = @transform_1, window_bounds = array<i64: 512, 128>}, {pipeline_mode = #tpu.pipeline_mode<synchronous>, transform_indices = @transform_2, window_bounds = array<i64: 1, 128>}, {pipeline_mode = #tpu.pipeline_mode<synchronous>, transform_indices = @transform_3, window_bounds = array<i64: 1, 128>}, {pipeline_mode = #tpu.pipeline_mode<synchronous>, transform_indices = @transform_4, window_bounds = array<i64: 1, 128>}, {pipeline_mode = #tpu.pipeline_mode<synchronous>, transform_indices = @transform_5, window_bounds = array<i64: 1, 128>}, {transform_indices = @transform_6, window_bounds = array<i64: 512, 128>}]} {
    %c0 = arith.constant 0 : index
    %c0_0 = arith.constant 0 : index
    %0 = vector.load %arg1[%c0, %c0_0] : memref<512x128xf32, #tpu.memory_space<vmem>>, vector<512x128xf32>
    %c0_1 = arith.constant 0 : index
    %c0_2 = arith.constant 0 : index
    %1 = vector.load %arg3[%c0_1, %c0_2] : memref<1x128xf32, #tpu.memory_space<vmem>>, vector<1x128xf32>
    %2 = vector.broadcast %1 : vector<1x128xf32> to vector<512x128xf32>
    %3 = arith.mulf %0, %2 : vector<512x128xf32>
    %c0_3 = arith.constant 0 : index
    %c0_4 = arith.constant 0 : index
    %4 = vector.load %arg4[%c0_3, %c0_4] : memref<1x128xf32, #tpu.memory_space<vmem>>, vector<1x128xf32>
    %5 = vector.broadcast %4 : vector<1x128xf32> to vector<512x128xf32>
    %6 = arith.addf %3, %5 : vector<512x128xf32>
    %c0_5 = arith.constant 0 : index
    %c0_6 = arith.constant 0 : index
    %7 = vector.load %arg2[%c0_5, %c0_6] : memref<512x128xf32, #tpu.memory_space<vmem>>, vector<512x128xf32>
    %c0_7 = arith.constant 0 : index
    %c0_8 = arith.constant 0 : index
    %8 = vector.load %arg5[%c0_7, %c0_8] : memref<1x128xf32, #tpu.memory_space<vmem>>, vector<1x128xf32>
    %9 = vector.broadcast %8 : vector<1x128xf32> to vector<512x128xf32>
    %10 = arith.mulf %7, %9 : vector<512x128xf32>
    %c0_9 = arith.constant 0 : index
    %c0_10 = arith.constant 0 : index
    %11 = vector.load %arg6[%c0_9, %c0_10] : memref<1x128xf32, #tpu.memory_space<vmem>>, vector<1x128xf32>
    %12 = vector.broadcast %11 : vector<1x128xf32> to vector<512x128xf32>
    %13 = arith.addf %10, %12 : vector<512x128xf32>
    %14 = arith.addf %13, %6 : vector<512x128xf32>
    %cst = arith.constant 0.000000e+00 : f32
    %15 = vector.broadcast %cst : f32 to vector<512x128xf32>
    %16 = arith.maximumf %14, %15 : vector<512x128xf32>
    %c0_11 = arith.constant 0 : index
    %c0_12 = arith.constant 0 : index
    %17 = vector.load %arg7[%c0_11, %c0_12] : memref<512x128xf32, #tpu.memory_space<vmem>>, vector<512x128xf32>
    tpu.vector_store %arg7[%c0_11, %c0_12], %16 {strides = array<i32>} : memref<512x128xf32, #tpu.memory_space<vmem>>, vector<512x128xf32>,
    return
  }
  func.func @transform_0(%arg0: i32) -> (i32, i32) {
    %c0_i32 = arith.constant 0 : i32
    %c0_i32_0 = arith.constant 0 : i32
    return %arg0, %c0_i32 : i32, i32
  }
  func.func @transform_1(%arg0: i32) -> (i32, i32) {
    %c0_i32 = arith.constant 0 : i32
    %c0_i32_0 = arith.constant 0 : i32
    return %arg0, %c0_i32 : i32, i32
  }
  func.func @transform_2(%arg0: i32) -> (i32, i32) {
    %c0_i32 = arith.constant 0 : i32
    %c0_i32_0 = arith.constant 0 : i32
    %c0_i32_1 = arith.constant 0 : i32
    return %c0_i32, %c0_i32_0 : i32, i32
  }
  func.func @transform_3(%arg0: i32) -> (i32, i32) {
    %c0_i32 = arith.constant 0 : i32
    %c0_i32_0 = arith.constant 0 : i32
    %c0_i32_1 = arith.constant 0 : i32
    return %c0_i32, %c0_i32_0 : i32, i32
  }
  func.func @transform_4(%arg0: i32) -> (i32, i32) {
    %c0_i32 = arith.constant 0 : i32
    %c0_i32_0 = arith.constant 0 : i32
    %c0_i32_1 = arith.constant 0 : i32
    return %c0_i32, %c0_i32_0 : i32, i32
  }
  func.func @transform_5(%arg0: i32) -> (i32, i32) {
    %c0_i32 = arith.constant 0 : i32
    %c0_i32_0 = arith.constant 0 : i32
    %c0_i32_1 = arith.constant 0 : i32
    return %c0_i32, %c0_i32_0 : i32, i32
  }
  func.func @transform_6(%arg0: i32) -> (i32, i32) {
    %c0_i32 = arith.constant 0 : i32
    %c0_i32_0 = arith.constant 0 : i32
    return %arg0, %c0_i32 : i32, i32
  }
}

module attributes {stable_mosaic.version = 11 : i64} {
  func.func @_bn_relu_conv_stats_kernel(%arg0: i32, %arg1: memref<512x128xf32, #tpu.memory_space<vmem>>, %arg2: memref<1x128xf32, #tpu.memory_space<vmem>>, %arg3: memref<1x128xf32, #tpu.memory_space<vmem>>, %arg4: memref<128x128xf32, #tpu.memory_space<vmem>>, %arg5: memref<512x128xf32, #tpu.memory_space<vmem>>, %arg6: memref<1x128xf32, #tpu.memory_space<vmem>>, %arg7: memref<1x128xf32, #tpu.memory_space<vmem>>) attributes {dimension_semantics = [#tpu.dimension_semantics<arbitrary>], iteration_bounds = array<i64: 1>, scalar_prefetch = 0 : i64, scratch_operands = 0 : i64, tpu.core_type = #tpu.core_type<tc>, window_params = [{transform_indices = @transform_0, window_bounds = array<i64: 512, 128>}, {pipeline_mode = #tpu.pipeline_mode<synchronous>, transform_indices = @transform_1, window_bounds = array<i64: 1, 128>}, {pipeline_mode = #tpu.pipeline_mode<synchronous>, transform_indices = @transform_2, window_bounds = array<i64: 1, 128>}, {pipeline_mode = #tpu.pipeline_mode<synchronous>, transform_indices = @transform_3, window_bounds = array<i64: 128, 128>}, {transform_indices = @transform_4, window_bounds = array<i64: 512, 128>}, {pipeline_mode = #tpu.pipeline_mode<synchronous>, transform_indices = @transform_5, window_bounds = array<i64: 1, 128>}, {pipeline_mode = #tpu.pipeline_mode<synchronous>, transform_indices = @transform_6, window_bounds = array<i64: 1, 128>}]} {
    %c0_i32 = arith.constant 0 : i32
    %0 = arith.cmpi eq, %arg0, %c0_i32 : i32
    %1 = arith.extui %0 : i1 to i32
    %c0_i32_0 = arith.constant 0 : i32
    %2 = arith.cmpi ne, %1, %c0_i32_0 : i32
    scf.if %2 {
      %cst_21 = arith.constant 0.000000e+00 : f32
      %26 = vector.broadcast %cst_21 : f32 to vector<1x128xf32>
      %c0_22 = arith.constant 0 : index
      %c0_23 = arith.constant 0 : index
      %27 = vector.load %arg6[%c0_22, %c0_23] : memref<1x128xf32, #tpu.memory_space<vmem>>, vector<1x128xf32>
      tpu.vector_store %arg6[%c0_22, %c0_23], %26 {strides = array<i32>} : memref<1x128xf32, #tpu.memory_space<vmem>>, vector<1x128xf32>,
      %cst_24 = arith.constant 0.000000e+00 : f32
      %28 = vector.broadcast %cst_24 : f32 to vector<1x128xf32>
      %c0_25 = arith.constant 0 : index
      %c0_26 = arith.constant 0 : index
      %29 = vector.load %arg7[%c0_25, %c0_26] : memref<1x128xf32, #tpu.memory_space<vmem>>, vector<1x128xf32>
      tpu.vector_store %arg7[%c0_25, %c0_26], %28 {strides = array<i32>} : memref<1x128xf32, #tpu.memory_space<vmem>>, vector<1x128xf32>,
    } else {
    }
    %c0 = arith.constant 0 : index
    %c0_1 = arith.constant 0 : index
    %3 = vector.load %arg1[%c0, %c0_1] : memref<512x128xf32, #tpu.memory_space<vmem>>, vector<512x128xf32>
    %c0_2 = arith.constant 0 : index
    %c0_3 = arith.constant 0 : index
    %4 = vector.load %arg2[%c0_2, %c0_3] : memref<1x128xf32, #tpu.memory_space<vmem>>, vector<1x128xf32>
    %5 = vector.broadcast %4 : vector<1x128xf32> to vector<512x128xf32>
    %6 = arith.mulf %3, %5 : vector<512x128xf32>
    %c0_4 = arith.constant 0 : index
    %c0_5 = arith.constant 0 : index
    %7 = vector.load %arg3[%c0_4, %c0_5] : memref<1x128xf32, #tpu.memory_space<vmem>>, vector<1x128xf32>
    %8 = vector.broadcast %7 : vector<1x128xf32> to vector<512x128xf32>
    %9 = arith.addf %6, %8 : vector<512x128xf32>
    %cst = arith.constant 0.000000e+00 : f32
    %10 = vector.broadcast %cst : f32 to vector<512x128xf32>
    %11 = arith.maximumf %9, %10 : vector<512x128xf32>
    %c0_6 = arith.constant 0 : index
    %c0_7 = arith.constant 0 : index
    %12 = vector.load %arg4[%c0_6, %c0_7] : memref<128x128xf32, #tpu.memory_space<vmem>>, vector<128x128xf32>
    %cst_8 = arith.constant dense<0.000000e+00> : vector<512x128xf32>
    %13 = tpu.matmul %11, %12, %cst_8 {dimension_numbers = #tpu.dot_dimension_numbers<[1], [0], [0], [1], [0, 0, 1, 1], [], []>} : vector<512x128xf32>, vector<128x128xf32>, vector<512x128xf32> -> vector<512x128xf32>
    %c0_9 = arith.constant 0 : index
    %c0_10 = arith.constant 0 : index
    %14 = vector.load %arg5[%c0_9, %c0_10] : memref<512x128xf32, #tpu.memory_space<vmem>>, vector<512x128xf32>
    tpu.vector_store %arg5[%c0_9, %c0_10], %13 {strides = array<i32>} : memref<512x128xf32, #tpu.memory_space<vmem>>, vector<512x128xf32>,
    %c0_11 = arith.constant 0 : index
    %c0_12 = arith.constant 0 : index
    %15 = vector.load %arg6[%c0_11, %c0_12] : memref<1x128xf32, #tpu.memory_space<vmem>>, vector<1x128xf32>
    %cst_13 = arith.constant dense<0.000000e+00> : vector<128xf32>
    %16 = vector.multi_reduction <add>, %13, %cst_13 [0] : vector<512x128xf32> to vector<128xf32>
    %17 = vector.shape_cast %16 : vector<128xf32> to vector<1x128xf32>
    %18 = arith.addf %15, %17 : vector<1x128xf32>
    %c0_14 = arith.constant 0 : index
    %c0_15 = arith.constant 0 : index
    %19 = vector.load %arg6[%c0_14, %c0_15] : memref<1x128xf32, #tpu.memory_space<vmem>>, vector<1x128xf32>
    tpu.vector_store %arg6[%c0_14, %c0_15], %18 {strides = array<i32>} : memref<1x128xf32, #tpu.memory_space<vmem>>, vector<1x128xf32>,
    %c0_16 = arith.constant 0 : index
    %c0_17 = arith.constant 0 : index
    %20 = vector.load %arg7[%c0_16, %c0_17] : memref<1x128xf32, #tpu.memory_space<vmem>>, vector<1x128xf32>
    %21 = arith.mulf %13, %13 : vector<512x128xf32>
    %cst_18 = arith.constant dense<0.000000e+00> : vector<128xf32>
    %22 = vector.multi_reduction <add>, %21, %cst_18 [0] : vector<512x128xf32> to vector<128xf32>
    %23 = vector.shape_cast %22 : vector<128xf32> to vector<1x128xf32>
    %24 = arith.addf %20, %23 : vector<1x128xf32>
    %c0_19 = arith.constant 0 : index
    %c0_20 = arith.constant 0 : index
    %25 = vector.load %arg7[%c0_19, %c0_20] : memref<1x128xf32, #tpu.memory_space<vmem>>, vector<1x128xf32>
    tpu.vector_store %arg7[%c0_19, %c0_20], %24 {strides = array<i32>} : memref<1x128xf32, #tpu.memory_space<vmem>>, vector<1x128xf32>,
    return
  }
  func.func @transform_0(%arg0: i32) -> (i32, i32) {
    %c0_i32 = arith.constant 0 : i32
    %c0_i32_0 = arith.constant 0 : i32
    return %arg0, %c0_i32 : i32, i32
  }
  func.func @transform_1(%arg0: i32) -> (i32, i32) {
    %c0_i32 = arith.constant 0 : i32
    %c0_i32_0 = arith.constant 0 : i32
    %c0_i32_1 = arith.constant 0 : i32
    return %c0_i32, %c0_i32_0 : i32, i32
  }
  func.func @transform_2(%arg0: i32) -> (i32, i32) {
    %c0_i32 = arith.constant 0 : i32
    %c0_i32_0 = arith.constant 0 : i32
    %c0_i32_1 = arith.constant 0 : i32
    return %c0_i32, %c0_i32_0 : i32, i32
  }
  func.func @transform_3(%arg0: i32) -> (i32, i32) {
    %c0_i32 = arith.constant 0 : i32
    %c0_i32_0 = arith.constant 0 : i32
    %c0_i32_1 = arith.constant 0 : i32
    return %c0_i32, %c0_i32_0 : i32, i32
  }
  func.func @transform_4(%arg0: i32) -> (i32, i32) {
    %c0_i32 = arith.constant 0 : i32
    %c0_i32_0 = arith.constant 0 : i32
    return %arg0, %c0_i32 : i32, i32
  }
  func.func @transform_5(%arg0: i32) -> (i32, i32) {
    %c0_i32 = arith.constant 0 : i32
    %c0_i32_0 = arith.constant 0 : i32
    %c0_i32_1 = arith.constant 0 : i32
    return %c0_i32, %c0_i32_0 : i32, i32
  }
  func.func @transform_6(%arg0: i32) -> (i32, i32) {
    %c0_i32 = arith.constant 0 : i32
    %c0_i32_0 = arith.constant 0 : i32
    %c0_i32_1 = arith.constant 0 : i32
    return %c0_i32, %c0_i32_0 : i32, i32
  }
}

</mosaic_0001>

<llo_original>
// kernel: bottleneck_forward.7
$region0: #{bottleneck_forward.7}
  #allocation0 [shape = 'u32[]', space=smem, size = 0x4, offset = 0x4, fixed_abs, tag = 'smem constant byte address 0x4 - core index']
  #allocation1 [shape = 'u32[144,128]{1,0:T(1,128)}', space=vmem, size = 0x12000, scoped, tag = 'internal scratch']
  %s0 = inlined_call_operand.vmem [shape: f32[512,128], index: 0, kind: input, shape index: {}]
  %s1 = inlined_call_operand.vmem [shape: f32[512,128], index: 1, kind: input, shape index: {}]
  %s2 = inlined_call_operand.vmem [shape: f32[1,128], index: 2, kind: input, shape index: {}]
  %s3 = inlined_call_operand.vmem [shape: f32[1,128], index: 3, kind: input, shape index: {}]
  %s4 = inlined_call_operand.vmem [shape: f32[1,128], index: 4, kind: input, shape index: {}]
  %s5 = inlined_call_operand.vmem [shape: f32[1,128], index: 5, kind: input, shape index: {}]
  %s6 = inlined_call_operand.vmem [shape: f32[512,128], index: 6, kind: output, shape index: {}]
  %s7 = sld [smem:[#allocation0]]
  $region34: #{bottleneck_forward.7} parent=0
    _
  %s9 = ssub.s32 1, %s7
  %s10 = scalar_select 0, %s9, %s7
  // Predicated region
  $region2: #{bottleneck_forward.7} parent=0 // pred_check
    _
  $region3: #{bottleneck_forward.7} parent=0 // pred_check_branch
    %12 = sbr.rel (0) target = $region5
  $region4: #{bottleneck_forward.7} parent=0 // pred_region
    _
  $region5: #{bottleneck_forward.7} parent=0 // pred_fallthru
    _
  // Predicated region
  $region6: #{bottleneck_forward.7} parent=0 // pred_check
    _
  $region7: #{bottleneck_forward.7} parent=0 // pred_check_branch
    %14 = sbr.rel (0) target = $region9
  $region8: #{bottleneck_forward.7} parent=0 // pred_region
    _
  $region9: #{bottleneck_forward.7} parent=0 // pred_fallthru
    _
  // Predicated region
  $region10: #{bottleneck_forward.7} parent=0 // pred_check
    _
  $region11: #{bottleneck_forward.7} parent=0 // pred_check_branch
    %16 = sbr.rel (0) target = $region13
  $region12: #{bottleneck_forward.7} parent=0 // pred_region
    _
  $region13: #{bottleneck_forward.7} parent=0 // pred_fallthru
    _
  // Predicated region
  $region14: #{bottleneck_forward.7} parent=0 // pred_check
    _
  $region15: #{bottleneck_forward.7} parent=0 // pred_check_branch
    %18 = sbr.rel (0) target = $region17
  $region16: #{bottleneck_forward.7} parent=0 // pred_region
    _
  $region17: #{bottleneck_forward.7} parent=0 // pred_fallthru
    _
  // Predicated region
  $region18: #{bottleneck_forward.7} parent=0 // pred_check
    _
  $region19: #{bottleneck_forward.7} parent=0 // pred_check_branch
    %20 = sbr.rel (0) target = $region21
  $region20: #{bottleneck_forward.7} parent=0 // pred_region
    _
  $region21: #{bottleneck_forward.7} parent=0 // pred_fallthru
    _
  // Predicated region
  $region22: #{bottleneck_forward.7} parent=0 // pred_check
    _
  $region23: #{bottleneck_forward.7} parent=0 // pred_check_branch
    %22 = sbr.rel (0) target = $region25
  $region24: #{bottleneck_forward.7} parent=0 // pred_region
    _
  $region25: #{bottleneck_forward.7} parent=0 // pred_fallthru
    _
  %v23 = vld [vmem:[%s0] sm:$0xff]
  %v24 = vld [vmem:[%s0 + $0x8] sm:$0xff]
  %v25 = vld [vmem:[%s0 + $0x10] sm:$0xff]
  %v26 = vld [vmem:[%s0 + $0x18] sm:$0xff]
  %v27 = vld [vmem:[%s0 + $0x20] sm:$0xff]
  %v28 = vld [vmem:[%s0 + $0x28] sm:$0xff]
  %v29 = vld [vmem:[%s0 + $0x30] sm:$0xff]
  %v30 = vld [vmem:[%s0 + $0x38] sm:$0xff]
  %v31 = vld [vmem:[%s0 + $0x40] sm:$0xff]
  %v32 = vld [vmem:[%s0 + $0x48] sm:$0xff]
  %v33 = vld [vmem:[%s0 + $0x50] sm:$0xff]
  %v34 = vld [vmem:[%s0 + $0x58] sm:$0xff]
  %v35 = vld [vmem:[%s0 + $0x60] sm:$0xff]
  %v36 = vld [vmem:[%s0 + $0x68] sm:$0xff]
  %v37 = vld [vmem:[%s0 + $0x70] sm:$0xff]
  %v38 = vld [vmem:[%s0 + $0x78] sm:$0xff]
  %v39 = vld [vmem:[%s0 + $0x80] sm:$0xff]
  %v40 = vld [vmem:[%s0 + $0x88] sm:$0xff]
  %v41 = vld [vmem:[%s0 + $0x90] sm:$0xff]
  %v42 = vld [vmem:[%s0 + $0x98] sm:$0xff]
  %v43 = vld [vmem:[%s0 + $0xa0] sm:$0xff]
  %v44 = vld [vmem:[%s0 + $0xa8] sm:$0xff]
  %v45 = vld [vmem:[%s0 + $0xb0] sm:$0xff]
  %v46 = vld [vmem:[%s0 + $0xb8] sm:$0xff]
  %v47 = vld [vmem:[%s0 + $0xc0] sm:$0xff]
  %v48 = vld [vmem:[%s0 + $0xc8] sm:$0xff]
  %v49 = vld [vmem:[%s0 + $0xd0] sm:$0xff]
  %v50 = vld [vmem:[%s0 + $0xd8] sm:$0xff]
  %v51 = vld [vmem:[%s0 + $0xe0] sm:$0xff]
  %v52 = vld [vmem:[%s0 + $0xe8] sm:$0xff]
  %v53 = vld [vmem:[%s0 + $0xf0] sm:$0xff]
  %v54 = vld [vmem:[%s0 + $0xf8] sm:$0xff]
  %v55 = vld [vmem:[%s0 + $0x100] sm:$0xff]
  %v56 = vld [vmem:[%s0 + $0x108] sm:$0xff]
  %v57 = vld [vmem:[%s0 + $0x110] sm:$0xff]
  %v58 = vld [vmem:[%s0 + $0x118] sm:$0xff]
  %v59 = vld [vmem:[%s0 + $0x120] sm:$0xff]
  %v60 = vld [vmem:[%s0 + $0x128] sm:$0xff]
  %v61 = vld [vmem:[%s0 + $0x130] sm:$0xff]
  %v62 = vld [vmem:[%s0 + $0x138] sm:$0xff]
  %v63 = vld [vmem:[%s0 + $0x140] sm:$0xff]
  %v64 = vld [vmem:[%s0 + $0x148] sm:$0xff]
  %v65 = vld [vmem:[%s0 + $0x150] sm:$0xff]
  %v66 = vld [vmem:[%s0 + $0x158] sm:$0xff]
  %v67 = vld [vmem:[%s0 + $0x160] sm:$0xff]
  %v68 = vld [vmem:[%s0 + $0x168] sm:$0xff]
  %v69 = vld [vmem:[%s0 + $0x170] sm:$0xff]
  %v70 = vld [vmem:[%s0 + $0x178] sm:$0xff]
  %v71 = vld [vmem:[%s0 + $0x180] sm:$0xff]
  %v72 = vld [vmem:[%s0 + $0x188] sm:$0xff]
  %v73 = vld [vmem:[%s0 + $0x190] sm:$0xff]
  %v74 = vld [vmem:[%s0 + $0x198] sm:$0xff]
  %v75 = vld [vmem:[%s0 + $0x1a0] sm:$0xff]
  %v76 = vld [vmem:[%s0 + $0x1a8] sm:$0xff]
  %v77 = vld [vmem:[%s0 + $0x1b0] sm:$0xff]
  %v78 = vld [vmem:[%s0 + $0x1b8] sm:$0xff]
  %v79 = vld [vmem:[%s0 + $0x1c0] sm:$0xff]
  %v80 = vld [vmem:[%s0 + $0x1c8] sm:$0xff]
  %v81 = vld [vmem:[%s0 + $0x1d0] sm:$0xff]
  %v82 = vld [vmem:[%s0 + $0x1d8] sm:$0xff]
  %v83 = vld [vmem:[%s0 + $0x1e0] sm:$0xff]
  %v84 = vld [vmem:[%s0 + $0x1e8] sm:$0xff]
  %v85 = vld [vmem:[%s0 + $0x1f0] sm:$0xff]
  %v86 = vld [vmem:[%s0 + $0x1f8] sm:$0xff]
  %v87 = vld [vmem:[%s2] sm:$0x1]
  %v89 = vlaneseq
  %v90 = vshrl.u32 %v89, 7
  %v91 = vsub.s32 0, %v90
  %v92 = vrot.slane %v87, %v91
  %v94 = vmul.f32 %v23, %v92
  %v95 = vmul.f32 %v24, %v92
  %v96 = vmul.f32 %v25, %v92
  %v97 = vmul.f32 %v26, %v92
  %v98 = vmul.f32 %v27, %v92
  %v99 = vmul.f32 %v28, %v92
  %v100 = vmul.f32 %v29, %v92
  %v101 = vmul.f32 %v30, %v92
  %v102 = vmul.f32 %v31, %v92
  %v103 = vmul.f32 %v32, %v92
  %v104 = vmul.f32 %v33, %v92
  %v105 = vmul.f32 %v34, %v92
  %v106 = vmul.f32 %v35, %v92
  %v107 = vmul.f32 %v36, %v92
  %v108 = vmul.f32 %v37, %v92
  %v109 = vmul.f32 %v38, %v92
  %v110 = vmul.f32 %v39, %v92
  %v111 = vmul.f32 %v40, %v92
  %v112 = vmul.f32 %v41, %v92
  %v113 = vmul.f32 %v42, %v92
  %v114 = vmul.f32 %v43, %v92
  %v115 = vmul.f32 %v44, %v92
  %v116 = vmul.f32 %v45, %v92
  %v117 = vmul.f32 %v46, %v92
  %v118 = vmul.f32 %v47, %v92
  %v119 = vmul.f32 %v48, %v92
  %v120 = vmul.f32 %v49, %v92
  %v121 = vmul.f32 %v50, %v92
  %v122 = vmul.f32 %v51, %v92
  %v123 = vmul.f32 %v52, %v92
  %v124 = vmul.f32 %v53, %v92
  %v125 = vmul.f32 %v54, %v92
  %v126 = vmul.f32 %v55, %v92
  %v127 = vmul.f32 %v56, %v92
  %v128 = vmul.f32 %v57, %v92
  %v129 = vmul.f32 %v58, %v92
  %v130 = vmul.f32 %v59, %v92
  %v131 = vmul.f32 %v60, %v92
  %v132 = vmul.f32 %v61, %v92
  %v133 = vmul.f32 %v62, %v92
  %v134 = vmul.f32 %v63, %v92
  %v135 = vmul.f32 %v64, %v92
  %v136 = vmul.f32 %v65, %v92
  %v137 = vmul.f32 %v66, %v92
  %v138 = vmul.f32 %v67, %v92
  %v139 = vmul.f32 %v68, %v92
  %v140 = vmul.f32 %v69, %v92
  %v141 = vmul.f32 %v70, %v92
  %v142 = vmul.f32 %v71, %v92
  %v143 = vmul.f32 %v72, %v92
  %v144 = vmul.f32 %v73, %v92
  %v145 = vmul.f32 %v74, %v92
  %v146 = vmul.f32 %v75, %v92
  %v147 = vmul.f32 %v76, %v92
  %v148 = vmul.f32 %v77, %v92
  %v149 = vmul.f32 %v78, %v92
  %v150 = vmul.f32 %v79, %v92
  %v151 = vmul.f32 %v80, %v92
  %v152 = vmul.f32 %v81, %v92
  %v153 = vmul.f32 %v82, %v92
  %v154 = vmul.f32 %v83, %v92
  %v155 = vmul.f32 %v84, %v92
  %v156 = vmul.f32 %v85, %v92
  %v157 = vmul.f32 %v86, %v92
  %v158 = vld [vmem:[%s3] sm:$0x1]
  %v160 = vlaneseq
  %v161 = vshrl.u32 %v160, 7
  %v162 = vsub.s32 0, %v161
  %v163 = vrot.slane %v158, %v162
  %v165 = vadd.f32 %v94, %v163
  %v166 = vadd.f32 %v95, %v163
  %v167 = vadd.f32 %v96, %v163
  %v168 = vadd.f32 %v97, %v163
  %v169 = vadd.f32 %v98, %v163
  %v170 = vadd.f32 %v99, %v163
  %v171 = vadd.f32 %v100, %v163
  %v172 = vadd.f32 %v101, %v163
  %v173 = vadd.f32 %v102, %v163
  %v174 = vadd.f32 %v103, %v163
  %v175 = vadd.f32 %v104, %v163
  %v176 = vadd.f32 %v105, %v163
  %v177 = vadd.f32 %v106, %v163
  %v178 = vadd.f32 %v107, %v163
  %v179 = vadd.f32 %v108, %v163
  %v180 = vadd.f32 %v109, %v163
  %v181 = vadd.f32 %v110, %v163
  %v182 = vadd.f32 %v111, %v163
  %v183 = vadd.f32 %v112, %v163
  %v184 = vadd.f32 %v113, %v163
  %v185 = vadd.f32 %v114, %v163
  %v186 = vadd.f32 %v115, %v163
  %v187 = vadd.f32 %v116, %v163
  %v188 = vadd.f32 %v117, %v163
  %v189 = vadd.f32 %v118, %v163
  %v190 = vadd.f32 %v119, %v163
  %v191 = vadd.f32 %v120, %v163
  %v192 = vadd.f32 %v121, %v163
  %v193 = vadd.f32 %v122, %v163
  %v194 = vadd.f32 %v123, %v163
  %v195 = vadd.f32 %v124, %v163
  %v196 = vadd.f32 %v125, %v163
  %v197 = vadd.f32 %v126, %v163
  %v198 = vadd.f32 %v127, %v163
  %v199 = vadd.f32 %v128, %v163
  %v200 = vadd.f32 %v129, %v163
  %v201 = vadd.f32 %v130, %v163
  %v202 = vadd.f32 %v131, %v163
  %v203 = vadd.f32 %v132, %v163
  %v204 = vadd.f32 %v133, %v163
  %v205 = vadd.f32 %v134, %v163
  %v206 = vadd.f32 %v135, %v163
  %v207 = vadd.f32 %v136, %v163
  %v208 = vadd.f32 %v137, %v163
  %v209 = vadd.f32 %v138, %v163
  %v210 = vadd.f32 %v139, %v163
  %v211 = vadd.f32 %v140, %v163
  %v212 = vadd.f32 %v141, %v163
  %v213 = vadd.f32 %v142, %v163
  %v214 = vadd.f32 %v143, %v163
  %v215 = vadd.f32 %v144, %v163
  %v216 = vadd.f32 %v145, %v163
  %v217 = vadd.f32 %v146, %v163
  %v218 = vadd.f32 %v147, %v163
  %v219 = vadd.f32 %v148, %v163
  %v220 = vadd.f32 %v149, %v163
  %v221 = vadd.f32 %v150, %v163
  %v222 = vadd.f32 %v151, %v163
  %v223 = vadd.f32 %v152, %v163
  %v224 = vadd.f32 %v153, %v163
  %v225 = vadd.f32 %v154, %v163
  %v226 = vadd.f32 %v155, %v163
  %v227 = vadd.f32 %v156, %v163
  %v228 = vadd.f32 %v157, %v163
  %v229 = vld [vmem:[%s1] sm:$0xff]
  %v230 = vld [vmem:[%s1 + $0x8] sm:$0xff]
  %v231 = vld [vmem:[%s1 + $0x10] sm:$0xff]
  %v232 = vld [vmem:[%s1 + $0x18] sm:$0xff]
  %v233 = vld [vmem:[%s1 + $0x20] sm:$0xff]
  %v234 = vld [vmem:[%s1 + $0x28] sm:$0xff]
  %v235 = vld [vmem:[%s1 + $0x30] sm:$0xff]
  %v236 = vld [vmem:[%s1 + $0x38] sm:$0xff]
  %v237 = vld [vmem:[%s1 + $0x40] sm:$0xff]
  %v238 = vld [vmem:[%s1 + $0x48] sm:$0xff]
  %v239 = vld [vmem:[%s1 + $0x50] sm:$0xff]
  %v240 = vld [vmem:[%s1 + $0x58] sm:$0xff]
  %v241 = vld [vmem:[%s1 + $0x60] sm:$0xff]
  %v242 = vld [vmem:[%s1 + $0x68] sm:$0xff]
  %v243 = vld [vmem:[%s1 + $0x70] sm:$0xff]
  %v244 = vld [vmem:[%s1 + $0x78] sm:$0xff]
  %v245 = vld [vmem:[%s1 + $0x80] sm:$0xff]
  %v246 = vld [vmem:[%s1 + $0x88] sm:$0xff]
  %v247 = vld [vmem:[%s1 + $0x90] sm:$0xff]
  %v248 = vld [vmem:[%s1 + $0x98] sm:$0xff]
  %v249 = vld [vmem:[%s1 + $0xa0] sm:$0xff]
  %v250 = vld [vmem:[%s1 + $0xa8] sm:$0xff]
  %v251 = vld [vmem:[%s1 + $0xb0] sm:$0xff]
  %v252 = vld [vmem:[%s1 + $0xb8] sm:$0xff]
  %v253 = vld [vmem:[%s1 + $0xc0] sm:$0xff]
  %v254 = vld [vmem:[%s1 + $0xc8] sm:$0xff]
  %v255 = vld [vmem:[%s1 + $0xd0] sm:$0xff]
  %v256 = vld [vmem:[%s1 + $0xd8] sm:$0xff]
  %v257 = vld [vmem:[%s1 + $0xe0] sm:$0xff]
  %v258 = vld [vmem:[%s1 + $0xe8] sm:$0xff]
  %v259 = vld [vmem:[%s1 + $0xf0] sm:$0xff]
  %v260 = vld [vmem:[%s1 + $0xf8] sm:$0xff]
  %v261 = vld [vmem:[%s1 + $0x100] sm:$0xff]
  %v262 = vld [vmem:[%s1 + $0x108] sm:$0xff]
  %v263 = vld [vmem:[%s1 + $0x110] sm:$0xff]
  %v264 = vld [vmem:[%s1 + $0x118] sm:$0xff]
  %v265 = vld [vmem:[%s1 + $0x120] sm:$0xff]
  %v266 = vld [vmem:[%s1 + $0x128] sm:$0xff]
  %v267 = vld [vmem:[%s1 + $0x130] sm:$0xff]
  %v268 = vld [vmem:[%s1 + $0x138] sm:$0xff]
  %v269 = vld [vmem:[%s1 + $0x140] sm:$0xff]
  %v270 = vld [vmem:[%s1 + $0x148] sm:$0xff]
  %v271 = vld [vmem:[%s1 + $0x150] sm:$0xff]
  %v272 = vld [vmem:[%s1 + $0x158] sm:$0xff]
  %v273 = vld [vmem:[%s1 + $0x160] sm:$0xff]
  %v274 = vld [vmem:[%s1 + $0x168] sm:$0xff]
  %v275 = vld [vmem:[%s1 + $0x170] sm:$0xff]
  %v276 = vld [vmem:[%s1 + $0x178] sm:$0xff]
  %v277 = vld [vmem:[%s1 + $0x180] sm:$0xff]
  %v278 = vld [vmem:[%s1 + $0x188] sm:$0xff]
  %v279 = vld [vmem:[%s1 + $0x190] sm:$0xff]
  %v280 = vld [vmem:[%s1 + $0x198] sm:$0xff]
  %v281 = vld [vmem:[%s1 + $0x1a0] sm:$0xff]
  %v282 = vld [vmem:[%s1 + $0x1a8] sm:$0xff]
  %v283 = vld [vmem:[%s1 + $0x1b0] sm:$0xff]
  %v284 = vld [vmem:[%s1 + $0x1b8] sm:$0xff]
  %v285 = vld [vmem:[%s1 + $0x1c0] sm:$0xff]
  %v286 = vld [vmem:[%s1 + $0x1c8] sm:$0xff]
  %v287 = vld [vmem:[%s1 + $0x1d0] sm:$0xff]
  %v288 = vld [vmem:[%s1 + $0x1d8] sm:$0xff]
  %v289 = vld [vmem:[%s1 + $0x1e0] sm:$0xff]
  %v290 = vld [vmem:[%s1 + $0x1e8] sm:$0xff]
  %v291 = vld [vmem:[%s1 + $0x1f0] sm:$0xff]
  %v292 = vld [vmem:[%s1 + $0x1f8] sm:$0xff]
  %v293 = vld [vmem:[%s4] sm:$0x1]
  %v295 = vlaneseq
  %v296 = vshrl.u32 %v295, 7
  %v297 = vsub.s32 0, %v296
  %v298 = vrot.slane %v293, %v297
  %v300 = vmul.f32 %v229, %v298
  %v301 = vmul.f32 %v230, %v298
  %v302 = vmul.f32 %v231, %v298
  %v303 = vmul.f32 %v232, %v298
  %v304 = vmul.f32 %v233, %v298
  %v305 = vmul.f32 %v234, %v298
  %v306 = vmul.f32 %v235, %v298
  %v307 = vmul.f32 %v236, %v298
  %v308 = vmul.f32 %v237, %v298
  %v309 = vmul.f32 %v238, %v298
  %v310 = vmul.f32 %v239, %v298
  %v311 = vmul.f32 %v240, %v298
  %v312 = vmul.f32 %v241, %v298
  %v313 = vmul.f32 %v242, %v298
  %v314 = vmul.f32 %v243, %v298
  %v315 = vmul.f32 %v244, %v298
  %v316 = vmul.f32 %v245, %v298
  %v317 = vmul.f32 %v246, %v298
  %v318 = vmul.f32 %v247, %v298
  %v319 = vmul.f32 %v248, %v298
  %v320 = vmul.f32 %v249, %v298
  %v321 = vmul.f32 %v250, %v298
  %v322 = vmul.f32 %v251, %v298
  %v323 = vmul.f32 %v252, %v298
  %v324 = vmul.f32 %v253, %v298
  %v325 = vmul.f32 %v254, %v298
  %v326 = vmul.f32 %v255, %v298
  %v327 = vmul.f32 %v256, %v298
  %v328 = vmul.f32 %v257, %v298
  %v329 = vmul.f32 %v258, %v298
  %v330 = vmul.f32 %v259, %v298
  %v331 = vmul.f32 %v260, %v298
  %v332 = vmul.f32 %v261, %v298
  %v333 = vmul.f32 %v262, %v298
  %v334 = vmul.f32 %v263, %v298
  %v335 = vmul.f32 %v264, %v298
  %v336 = vmul.f32 %v265, %v298
  %v337 = vmul.f32 %v266, %v298
  %v338 = vmul.f32 %v267, %v298
  %v339 = vmul.f32 %v268, %v298
  %v340 = vmul.f32 %v269, %v298
  %v341 = vmul.f32 %v270, %v298
  %v342 = vmul.f32 %v271, %v298
  %v343 = vmul.f32 %v272, %v298
  %v344 = vmul.f32 %v273, %v298
  %v345 = vmul.f32 %v274, %v298
  %v346 = vmul.f32 %v275, %v298
  %v347 = vmul.f32 %v276, %v298
  %v348 = vmul.f32 %v277, %v298
  %v349 = vmul.f32 %v278, %v298
  %v350 = vmul.f32 %v279, %v298
  %v351 = vmul.f32 %v280, %v298
  %v352 = vmul.f32 %v281, %v298
  %v353 = vmul.f32 %v282, %v298
  %v354 = vmul.f32 %v283, %v298
  %v355 = vmul.f32 %v284, %v298
  %v356 = vmul.f32 %v285, %v298
  %v357 = vmul.f32 %v286, %v298
  %v358 = vmul.f32 %v287, %v298
  %v359 = vmul.f32 %v288, %v298
  %v360 = vmul.f32 %v289, %v298
  %v361 = vmul.f32 %v290, %v298
  %v362 = vmul.f32 %v291, %v298
  %v363 = vmul.f32 %v292, %v298
  %v364 = vld [vmem:[%s5] sm:$0x1]
  %v366 = vlaneseq
  %v367 = vshrl.u32 %v366, 7
  %v368 = vsub.s32 0, %v367
  %v369 = vrot.slane %v364, %v368
  %v371 = vadd.f32 %v300, %v369
  %v372 = vadd.f32 %v301, %v369
  %v373 = vadd.f32 %v302, %v369
  %v374 = vadd.f32 %v303, %v369
  %v375 = vadd.f32 %v304, %v369
  %v376 = vadd.f32 %v305, %v369
  %v377 = vadd.f32 %v306, %v369
  %v378 = vadd.f32 %v307, %v369
  %v379 = vadd.f32 %v308, %v369
  %v380 = vadd.f32 %v309, %v369
  %v381 = vadd.f32 %v310, %v369
  %v382 = vadd.f32 %v311, %v369
  %v383 = vadd.f32 %v312, %v369
  %v384 = vadd.f32 %v313, %v369
  %v385 = vadd.f32 %v314, %v369
  %v386 = vadd.f32 %v315, %v369
  %v387 = vadd.f32 %v316, %v369
  %v388 = vadd.f32 %v317, %v369
  %v389 = vadd.f32 %v318, %v369
  %v390 = vadd.f32 %v319, %v369
  %v391 = vadd.f32 %v320, %v369
  %v392 = vadd.f32 %v321, %v369
  %v393 = vadd.f32 %v322, %v369
  %v394 = vadd.f32 %v323, %v369
  %v395 = vadd.f32 %v324, %v369
  %v396 = vadd.f32 %v325, %v369
  %v397 = vadd.f32 %v326, %v369
  %v398 = vadd.f32 %v327, %v369
  %v399 = vadd.f32 %v328, %v369
  %v400 = vadd.f32 %v329, %v369
  %v401 = vadd.f32 %v330, %v369
  %v402 = vadd.f32 %v331, %v369
  %v403 = vadd.f32 %v332, %v369
  %v404 = vadd.f32 %v333, %v369
  %v405 = vadd.f32 %v334, %v369
  %v406 = vadd.f32 %v335, %v369
  %v407 = vadd.f32 %v336, %v369
  %v408 = vadd.f32 %v337, %v369
  %v409 = vadd.f32 %v338, %v369
  %v410 = vadd.f32 %v339, %v369
  %v411 = vadd.f32 %v340, %v369
  %v412 = vadd.f32 %v341, %v369
  %v413 = vadd.f32 %v342, %v369
  %v414 = vadd.f32 %v343, %v369
  %v415 = vadd.f32 %v344, %v369
  %v416 = vadd.f32 %v345, %v369
  %v417 = vadd.f32 %v346, %v369
  %v418 = vadd.f32 %v347, %v369
  %v419 = vadd.f32 %v348, %v369
  %v420 = vadd.f32 %v349, %v369
  %v421 = vadd.f32 %v350, %v369
  %v422 = vadd.f32 %v351, %v369
  %v423 = vadd.f32 %v352, %v369
  %v424 = vadd.f32 %v353, %v369
  %v425 = vadd.f32 %v354, %v369
  %v426 = vadd.f32 %v355, %v369
  %v427 = vadd.f32 %v356, %v369
  %v428 = vadd.f32 %v357, %v369
  %v429 = vadd.f32 %v358, %v369
  %v430 = vadd.f32 %v359, %v369
  %v431 = vadd.f32 %v360, %v369
  %v432 = vadd.f32 %v361, %v369
  %v433 = vadd.f32 %v362, %v369
  %v434 = vadd.f32 %v363, %v369
  %v435 = vadd.f32 %v371, %v165
  %v436 = vadd.f32 %v372, %v166
  %v437 = vadd.f32 %v373, %v167
  %v438 = vadd.f32 %v374, %v168
  %v439 = vadd.f32 %v375, %v169
  %v440 = vadd.f32 %v376, %v170
  %v441 = vadd.f32 %v377, %v171
  %v442 = vadd.f32 %v378, %v172
  %v443 = vadd.f32 %v379, %v173
  %v444 = vadd.f32 %v380, %v174
  %v445 = vadd.f32 %v381, %v175
  %v446 = vadd.f32 %v382, %v176
  %v447 = vadd.f32 %v383, %v177
  %v448 = vadd.f32 %v384, %v178
  %v449 = vadd.f32 %v385, %v179
  %v450 = vadd.f32 %v386, %v180
  %v451 = vadd.f32 %v387, %v181
  %v452 = vadd.f32 %v388, %v182
  %v453 = vadd.f32 %v389, %v183
  %v454 = vadd.f32 %v390, %v184
  %v455 = vadd.f32 %v391, %v185
  %v456 = vadd.f32 %v392, %v186
  %v457 = vadd.f32 %v393, %v187
  %v458 = vadd.f32 %v394, %v188
  %v459 = vadd.f32 %v395, %v189
  %v460 = vadd.f32 %v396, %v190
  %v461 = vadd.f32 %v397, %v191
  %v462 = vadd.f32 %v398, %v192
  %v463 = vadd.f32 %v399, %v193
  %v464 = vadd.f32 %v400, %v194
  %v465 = vadd.f32 %v401, %v195
  %v466 = vadd.f32 %v402, %v196
  %v467 = vadd.f32 %v403, %v197
  %v468 = vadd.f32 %v404, %v198
  %v469 = vadd.f32 %v405, %v199
  %v470 = vadd.f32 %v406, %v200
  %v471 = vadd.f32 %v407, %v201
  %v472 = vadd.f32 %v408, %v202
  %v473 = vadd.f32 %v409, %v203
  %v474 = vadd.f32 %v410, %v204
  %v475 = vadd.f32 %v411, %v205
  %v476 = vadd.f32 %v412, %v206
  %v477 = vadd.f32 %v413, %v207
  %v478 = vadd.f32 %v414, %v208
  %v479 = vadd.f32 %v415, %v209
  %v480 = vadd.f32 %v416, %v210
  %v481 = vadd.f32 %v417, %v211
  %v482 = vadd.f32 %v418, %v212
  %v483 = vadd.f32 %v419, %v213
  %v484 = vadd.f32 %v420, %v214
  %v485 = vadd.f32 %v421, %v215
  %v486 = vadd.f32 %v422, %v216
  %v487 = vadd.f32 %v423, %v217
  %v488 = vadd.f32 %v424, %v218
  %v489 = vadd.f32 %v425, %v219
  %v490 = vadd.f32 %v426, %v220
  %v491 = vadd.f32 %v427, %v221
  %v492 = vadd.f32 %v428, %v222
  %v493 = vadd.f32 %v429, %v223
  %v494 = vadd.f32 %v430, %v224
  %v495 = vadd.f32 %v431, %v225
  %v496 = vadd.f32 %v432, %v226
  %v497 = vadd.f32 %v433, %v227
  %v498 = vadd.f32 %v434, %v228
  %v499 = vmax.f32 %v435, 0.0
  %v500 = vmax.f32 %v436, 0.0
  %v501 = vmax.f32 %v437, 0.0
  %v502 = vmax.f32 %v438, 0.0
  %v503 = vmax.f32 %v439, 0.0
  %v504 = vmax.f32 %v440, 0.0
  %v505 = vmax.f32 %v441, 0.0
  %v506 = vmax.f32 %v442, 0.0
  %v507 = vmax.f32 %v443, 0.0
  %v508 = vmax.f32 %v444, 0.0
  %v509 = vmax.f32 %v445, 0.0
  %v510 = vmax.f32 %v446, 0.0
  %v511 = vmax.f32 %v447, 0.0
  %v512 = vmax.f32 %v448, 0.0
  %v513 = vmax.f32 %v449, 0.0
  %v514 = vmax.f32 %v450, 0.0
  %v515 = vmax.f32 %v451, 0.0
  %v516 = vmax.f32 %v452, 0.0
  %v517 = vmax.f32 %v453, 0.0
  %v518 = vmax.f32 %v454, 0.0
  %v519 = vmax.f32 %v455, 0.0
  %v520 = vmax.f32 %v456, 0.0
  %v521 = vmax.f32 %v457, 0.0
  %v522 = vmax.f32 %v458, 0.0
  %v523 = vmax.f32 %v459, 0.0
  %v524 = vmax.f32 %v460, 0.0
  %v525 = vmax.f32 %v461, 0.0
  %v526 = vmax.f32 %v462, 0.0
  %v527 = vmax.f32 %v463, 0.0
  %v528 = vmax.f32 %v464, 0.0
  %v529 = vmax.f32 %v465, 0.0
  %v530 = vmax.f32 %v466, 0.0
  %v531 = vmax.f32 %v467, 0.0
  %v532 = vmax.f32 %v468, 0.0
  %v533 = vmax.f32 %v469, 0.0
  %v534 = vmax.f32 %v470, 0.0
  %v535 = vmax.f32 %v471, 0.0
  %v536 = vmax.f32 %v472, 0.0
  %v537 = vmax.f32 %v473, 0.0
  %v538 = vmax.f32 %v474, 0.0
  %v539 = vmax.f32 %v475, 0.0
  %v540 = vmax.f32 %v476, 0.0
  %v541 = vmax.f32 %v477, 0.0
  %v542 = vmax.f32 %v478, 0.0
  %v543 = vmax.f32 %v479, 0.0
  %v544 = vmax.f32 %v480, 0.0
  %v545 = vmax.f32 %v481, 0.0
  %v546 = vmax.f32 %v482, 0.0
  %v547 = vmax.f32 %v483, 0.0
  %v548 = vmax.f32 %v484, 0.0
  %v549 = vmax.f32 %v485, 0.0
  %v550 = vmax.f32 %v486, 0.0
  %v551 = vmax.f32 %v487, 0.0
  %v552 = vmax.f32 %v488, 0.0
  %v553 = vmax.f32 %v489, 0.0
  %v554 = vmax.f32 %v490, 0.0
  %v555 = vmax.f32 %v491, 0.0
  %v556 = vmax.f32 %v492, 0.0
  %v557 = vmax.f32 %v493, 0.0
  %v558 = vmax.f32 %v494, 0.0
  %v559 = vmax.f32 %v495, 0.0
  %v560 = vmax.f32 %v496, 0.0
  %v561 = vmax.f32 %v497, 0.0
  %v562 = vmax.f32 %v498, 0.0
  %563 = vst [vmem:[%s6] sm:$0xff] %v499
  %564 = vst [vmem:[%s6 + $0x8] sm:$0xff] %v500
  %565 = vst [vmem:[%s6 + $0x10] sm:$0xff] %v501
  %566 = vst [vmem:[%s6 + $0x18] sm:$0xff] %v502
  %567 = vst [vmem:[%s6 + $0x20] sm:$0xff] %v503
  %568 = vst [vmem:[%s6 + $0x28] sm:$0xff] %v504
  %569 = vst [vmem:[%s6 + $0x30] sm:$0xff] %v505
  %570 = vst [vmem:[%s6 + $0x38] sm:$0xff] %v506
  %571 = vst [vmem:[%s6 + $0x40] sm:$0xff] %v507
  %572 = vst [vmem:[%s6 + $0x48] sm:$0xff] %v508
  %573 = vst [vmem:[%s6 + $0x50] sm:$0xff] %v509
  %574 = vst [vmem:[%s6 + $0x58] sm:$0xff] %v510
  %575 = vst [vmem:[%s6 + $0x60] sm:$0xff] %v511
  %576 = vst [vmem:[%s6 + $0x68] sm:$0xff] %v512
  %577 = vst [vmem:[%s6 + $0x70] sm:$0xff] %v513
  %578 = vst [vmem:[%s6 + $0x78] sm:$0xff] %v514
  %579 = vst [vmem:[%s6 + $0x80] sm:$0xff] %v515
  %580 = vst [vmem:[%s6 + $0x88] sm:$0xff] %v516
  %581 = vst [vmem:[%s6 + $0x90] sm:$0xff] %v517
  %582 = vst [vmem:[%s6 + $0x98] sm:$0xff] %v518
  %583 = vst [vmem:[%s6 + $0xa0] sm:$0xff] %v519
  %584 = vst [vmem:[%s6 + $0xa8] sm:$0xff] %v520
  %585 = vst [vmem:[%s6 + $0xb0] sm:$0xff] %v521
  %586 = vst [vmem:[%s6 + $0xb8] sm:$0xff] %v522
  %587 = vst [vmem:[%s6 + $0xc0] sm:$0xff] %v523
  %588 = vst [vmem:[%s6 + $0xc8] sm:$0xff] %v524
  %589 = vst [vmem:[%s6 + $0xd0] sm:$0xff] %v525
  %590 = vst [vmem:[%s6 + $0xd8] sm:$0xff] %v526
  %591 = vst [vmem:[%s6 + $0xe0] sm:$0xff] %v527
  %592 = vst [vmem:[%s6 + $0xe8] sm:$0xff] %v528
  %593 = vst [vmem:[%s6 + $0xf0] sm:$0xff] %v529
  %594 = vst [vmem:[%s6 + $0xf8] sm:$0xff] %v530
  %595 = vst [vmem:[%s6 + $0x100] sm:$0xff] %v531
  %596 = vst [vmem:[%s6 + $0x108] sm:$0xff] %v532
  %597 = vst [vmem:[%s6 + $0x110] sm:$0xff] %v533
  %598 = vst [vmem:[%s6 + $0x118] sm:$0xff] %v534
  %599 = vst [vmem:[%s6 + $0x120] sm:$0xff] %v535
  %600 = vst [vmem:[%s6 + $0x128] sm:$0xff] %v536
  %601 = vst [vmem:[%s6 + $0x130] sm:$0xff] %v537
  %602 = vst [vmem:[%s6 + $0x138] sm:$0xff] %v538
  %603 = vst [vmem:[%s6 + $0x140] sm:$0xff] %v539
  %604 = vst [vmem:[%s6 + $0x148] sm:$0xff] %v540
  %605 = vst [vmem:[%s6 + $0x150] sm:$0xff] %v541
  %606 = vst [vmem:[%s6 + $0x158] sm:$0xff] %v542
  %607 = vst [vmem:[%s6 + $0x160] sm:$0xff] %v543
  %608 = vst [vmem:[%s6 + $0x168] sm:$0xff] %v544
  %609 = vst [vmem:[%s6 + $0x170] sm:$0xff] %v545
  %610 = vst [vmem:[%s6 + $0x178] sm:$0xff] %v546
  %611 = vst [vmem:[%s6 + $0x180] sm:$0xff] %v547
  %612 = vst [vmem:[%s6 + $0x188] sm:$0xff] %v548
  %613 = vst [vmem:[%s6 + $0x190] sm:$0xff] %v549
  %614 = vst [vmem:[%s6 + $0x198] sm:$0xff] %v550
  %615 = vst [vmem:[%s6 + $0x1a0] sm:$0xff] %v551
  %616 = vst [vmem:[%s6 + $0x1a8] sm:$0xff] %v552
  %617 = vst [vmem:[%s6 + $0x1b0] sm:$0xff] %v553
  %618 = vst [vmem:[%s6 + $0x1b8] sm:$0xff] %v554
  %619 = vst [vmem:[%s6 + $0x1c0] sm:$0xff] %v555
  %620 = vst [vmem:[%s6 + $0x1c8] sm:$0xff] %v556
  %621 = vst [vmem:[%s6 + $0x1d0] sm:$0xff] %v557
  %622 = vst [vmem:[%s6 + $0x1d8] sm:$0xff] %v558
  %623 = vst [vmem:[%s6 + $0x1e0] sm:$0xff] %v559
  %624 = vst [vmem:[%s6 + $0x1e8] sm:$0xff] %v560
  %625 = vst [vmem:[%s6 + $0x1f0] sm:$0xff] %v561
  %626 = vst [vmem:[%s6 + $0x1f8] sm:$0xff] %v562
  // Predicated region
  $region26: #{bottleneck_forward.7} parent=0 // pred_check
    _
  $region27: #{bottleneck_forward.7} parent=0 // pred_check_branch
    %628 = sbr.rel (0) target = $region29
  $region28: #{bottleneck_forward.7} parent=0 // pred_region
    _
  $region29: #{bottleneck_forward.7} parent=0 // pred_fallthru
    _
  // Predicated region
  $region30: #{bottleneck_forward.7} parent=0 // pred_check
    _
  $region31: #{bottleneck_forward.7} parent=0 // pred_check_branch
    %630 = sbr.rel (0) target = $region33
  $region32: #{bottleneck_forward.7} parent=0 // pred_region
    _
  $region33: #{bottleneck_forward.7} parent=0 // pred_fallthru
    _

// kernel: bottleneck_forward.4
$region0: #{bottleneck_forward.4}
  #allocation0 [shape = 'u32[]', space=smem, size = 0x4, offset = 0x4, fixed_abs, tag = 'smem constant byte address 0x4 - core index']
  #allocation1 [shape = 'u32[144,128]{1,0:T(1,128)}', space=vmem, size = 0x12000, scoped, tag = 'internal scratch']
  %s0 = inlined_call_operand.vmem [shape: f32[512,128], index: 0, kind: input, shape index: {}]
  %s1 = inlined_call_operand.vmem [shape: f32[128,128], index: 1, kind: input, shape index: {}]
  %s2 = inlined_call_operand.vmem [shape: f32[512,128], index: 2, kind: output, shape index: {0}]
  %s3 = inlined_call_operand.vmem [shape: f32[1,128], index: 3, kind: output, shape index: {1}]
  %s4 = inlined_call_operand.vmem [shape: f32[1,128], index: 4, kind: output, shape index: {2}]
  %5 = xla_tuple %s2, %s3, %s4
  %s6 = sld [smem:[#allocation0]]
  $region38: #{bottleneck_forward.4} parent=0
    _
  %s8 = ssub.s32 1, %s6
  %s9 = scalar_select 0, %s8, %s6
  // Predicated region
  $region2: #{bottleneck_forward.4} parent=0 // pred_check
    _
  $region3: #{bottleneck_forward.4} parent=0 // pred_check_branch
    %11 = sbr.rel (0) target = $region5
  $region4: #{bottleneck_forward.4} parent=0 // pred_region
    _
  $region5: #{bottleneck_forward.4} parent=0 // pred_fallthru
    _
  // Predicated region
  $region6: #{bottleneck_forward.4} parent=0 // pred_check
    _
  $region7: #{bottleneck_forward.4} parent=0 // pred_check_branch
    %13 = sbr.rel (0) target = $region9
  $region8: #{bottleneck_forward.4} parent=0 // pred_region
    _
  $region9: #{bottleneck_forward.4} parent=0 // pred_fallthru
    _
  %p14 = scmp.eq.s32.totalorder 0, 0
  // Predicated region
  $region10: #{bottleneck_forward.4} parent=0 // pred_check
    %p15 = pneg %p14
  $region11: #{bottleneck_forward.4} parent=0 // pred_check_branch
    %17 = sbr.rel (%p15) target = $region13
  $region12: #{bottleneck_forward.4} parent=0 // pred_region
    %18 = vst [vmem:[%s3] sm:$0x1] 0.0
    %19 = vst [vmem:[%s4] sm:$0x1] 0.0
  $region13: #{bottleneck_forward.4} parent=0 // pred_fallthru
    _
  %v20 = vld [vmem:[%s0] sm:$0xff]
  %v21 = vld [vmem:[%s0 + $0x8] sm:$0xff]
  %v22 = vld [vmem:[%s0 + $0x10] sm:$0xff]
  %v23 = vld [vmem:[%s0 + $0x18] sm:$0xff]
  %v24 = vld [vmem:[%s0 + $0x20] sm:$0xff]
  %v25 = vld [vmem:[%s0 + $0x28] sm:$0xff]
  %v26 = vld [vmem:[%s0 + $0x30] sm:$0xff]
  %v27 = vld [vmem:[%s0 + $0x38] sm:$0xff]
  %v28 = vld [vmem:[%s0 + $0x40] sm:$0xff]
  %v29 = vld [vmem:[%s0 + $0x48] sm:$0xff]
  %v30 = vld [vmem:[%s0 + $0x50] sm:$0xff]
  %v31 = vld [vmem:[%s0 + $0x58] sm:$0xff]
  %v32 = vld [vmem:[%s0 + $0x60] sm:$0xff]
  %v33 = vld [vmem:[%s0 + $0x68] sm:$0xff]
  %v34 = vld [vmem:[%s0 + $0x70] sm:$0xff]
  %v35 = vld [vmem:[%s0 + $0x78] sm:$0xff]
  %v36 = vld [vmem:[%s0 + $0x80] sm:$0xff]
  %v37 = vld [vmem:[%s0 + $0x88] sm:$0xff]
  %v38 = vld [vmem:[%s0 + $0x90] sm:$0xff]
  %v39 = vld [vmem:[%s0 + $0x98] sm:$0xff]
  %v40 = vld [vmem:[%s0 + $0xa0] sm:$0xff]
  %v41 = vld [vmem:[%s0 + $0xa8] sm:$0xff]
  %v42 = vld [vmem:[%s0 + $0xb0] sm:$0xff]
  %v43 = vld [vmem:[%s0 + $0xb8] sm:$0xff]
  %v44 = vld [vmem:[%s0 + $0xc0] sm:$0xff]
  %v45 = vld [vmem:[%s0 + $0xc8] sm:$0xff]
  %v46 = vld [vmem:[%s0 + $0xd0] sm:$0xff]
  %v47 = vld [vmem:[%s0 + $0xd8] sm:$0xff]
  %v48 = vld [vmem:[%s0 + $0xe0] sm:$0xff]
  %v49 = vld [vmem:[%s0 + $0xe8] sm:$0xff]
  %v50 = vld [vmem:[%s0 + $0xf0] sm:$0xff]
  %v51 = vld [vmem:[%s0 + $0xf8] sm:$0xff]
  %v52 = vld [vmem:[%s0 + $0x100] sm:$0xff]
  %v53 = vld [vmem:[%s0 + $0x108] sm:$0xff]
  %v54 = vld [vmem:[%s0 + $0x110] sm:$0xff]
  %v55 = vld [vmem:[%s0 + $0x118] sm:$0xff]
  %v56 = vld [vmem:[%s0 + $0x120] sm:$0xff]
  %v57 = vld [vmem:[%s0 + $0x128] sm:$0xff]
  %v58 = vld [vmem:[%s0 + $0x130] sm:$0xff]
  %v59 = vld [vmem:[%s0 + $0x138] sm:$0xff]
  %v60 = vld [vmem:[%s0 + $0x140] sm:$0xff]
  %v61 = vld [vmem:[%s0 + $0x148] sm:$0xff]
  %v62 = vld [vmem:[%s0 + $0x150] sm:$0xff]
  %v63 = vld [vmem:[%s0 + $0x158] sm:$0xff]
  %v64 = vld [vmem:[%s0 + $0x160] sm:$0xff]
  %v65 = vld [vmem:[%s0 + $0x168] sm:$0xff]
  %v66 = vld [vmem:[%s0 + $0x170] sm:$0xff]
  %v67 = vld [vmem:[%s0 + $0x178] sm:$0xff]
  %v68 = vld [vmem:[%s0 + $0x180] sm:$0xff]
  %v69 = vld [vmem:[%s0 + $0x188] sm:$0xff]
  %v70 = vld [vmem:[%s0 + $0x190] sm:$0xff]
  %v71 = vld [vmem:[%s0 + $0x198] sm:$0xff]
  %v72 = vld [vmem:[%s0 + $0x1a0] sm:$0xff]
  %v73 = vld [vmem:[%s0 + $0x1a8] sm:$0xff]
  %v74 = vld [vmem:[%s0 + $0x1b0] sm:$0xff]
  %v75 = vld [vmem:[%s0 + $0x1b8] sm:$0xff]
  %v76 = vld [vmem:[%s0 + $0x1c0] sm:$0xff]
  %v77 = vld [vmem:[%s0 + $0x1c8] sm:$0xff]
  %v78 = vld [vmem:[%s0 + $0x1d0] sm:$0xff]
  %v79 = vld [vmem:[%s0 + $0x1d8] sm:$0xff]
  %v80 = vld [vmem:[%s0 + $0x1e0] sm:$0xff]
  %v81 = vld [vmem:[%s0 + $0x1e8] sm:$0xff]
  %v82 = vld [vmem:[%s0 + $0x1f0] sm:$0xff]
  %v83 = vld [vmem:[%s0 + $0x1f8] sm:$0xff]
  %v84 = vld [vmem:[%s1] sm:$0xff]
  %v85 = vld [vmem:[%s1 + $0x8] sm:$0xff]
  %v86 = vld [vmem:[%s1 + $0x10] sm:$0xff]
  %v87 = vld [vmem:[%s1 + $0x18] sm:$0xff]
  %v88 = vld [vmem:[%s1 + $0x20] sm:$0xff]
  %v89 = vld [vmem:[%s1 + $0x28] sm:$0xff]
  %v90 = vld [vmem:[%s1 + $0x30] sm:$0xff]
  %v91 = vld [vmem:[%s1 + $0x38] sm:$0xff]
  %v92 = vld [vmem:[%s1 + $0x40] sm:$0xff]
  %v93 = vld [vmem:[%s1 + $0x48] sm:$0xff]
  %v94 = vld [vmem:[%s1 + $0x50] sm:$0xff]
  %v95 = vld [vmem:[%s1 + $0x58] sm:$0xff]
  %v96 = vld [vmem:[%s1 + $0x60] sm:$0xff]
  %v97 = vld [vmem:[%s1 + $0x68] sm:$0xff]
  %v98 = vld [vmem:[%s1 + $0x70] sm:$0xff]
  %v99 = vld [vmem:[%s1 + $0x78] sm:$0xff]
  %100 = vmatprep.subr.mxu0 0.0
  %101 = vmatpush1.msra.mxu0 %v99
  %102 = vmatprep.subr.mxu0 0.0
  %103 = vmatpush1.msra.mxu0 %v98
  %104 = vmatprep.subr.mxu0 0.0
  %105 = vmatpush1.msra.mxu0 %v97
  %106 = vmatprep.subr.mxu0 0.0
  %107 = vmatpush1.msra.mxu0 %v96
  %108 = vmatprep.subr.mxu0 0.0
  %109 = vmatpush1.msra.mxu0 %v95
  %110 = vmatprep.subr.mxu0 0.0
  %111 = vmatpush1.msra.mxu0 %v94
  %112 = vmatprep.subr.mxu0 0.0
  %113 = vmatpush1.msra.mxu0 %v93
  %114 = vmatprep.subr.mxu0 0.0
  %115 = vmatpush1.msra.mxu0 %v92
  %116 = vmatprep.subr.mxu0 0.0
  %117 = vmatpush1.msra.mxu0 %v91
  %118 = vmatprep.subr.mxu0 0.0
  %119 = vmatpush1.msra.mxu0 %v90
  %120 = vmatprep.subr.mxu0 0.0
  %121 = vmatpush1.msra.mxu0 %v89
  %122 = vmatprep.subr.mxu0 0.0
  %123 = vmatpush1.msra.mxu0 %v88
  %124 = vmatprep.subr.mxu0 0.0
  %125 = vmatpush1.msra.mxu0 %v87
  %126 = vmatprep.subr.mxu0 0.0
  %127 = vmatpush1.msra.mxu0 %v86
  %128 = vmatprep.subr.mxu0 0.0
  %129 = vmatpush1.msra.mxu0 %v85
  %130 = vmatprep.subr.mxu0 0.0
  %131 = vmatpush1.msra.mxu0 %v84
  %132 = vmatprep.subr.mxu0 0.0
  %133 = vmatpush2.msra.mxu0 0.0
  %134 = vmatprep.subr.mxu0 0.0
  %135 = vmatpush2.msra.mxu0 0.0
  %136 = vmatprep.subr.mxu0 0.0
  %137 = vmatpush2.msra.mxu0 0.0
  %138 = vmatprep.subr.mxu0 0.0
  %139 = vmatpush2.msra.mxu0 0.0
  %140 = vmatprep.subr.mxu0 0.0
  %141 = vmatpush2.msra.mxu0 0.0
  %142 = vmatprep.subr.mxu0 0.0
  %143 = vmatpush2.msra.mxu0 0.0
  %144 = vmatprep.subr.mxu0 0.0
  %145 = vmatpush2.msra.mxu0 0.0
  %146 = vmatprep.subr.mxu0 0.0
  %147 = vmatpush2.msra.mxu0 0.0
  %148 = vmatprep.subr.mxu0 0.0
  %149 = vmatpush2.msra.mxu0 0.0
  %150 = vmatprep.subr.mxu0 0.0
  %151 = vmatpush2.msra.mxu0 0.0
  %152 = vmatprep.subr.mxu0 0.0
  %153 = vmatpush2.msra.mxu0 0.0
  %154 = vmatprep.subr.mxu0 0.0
  %155 = vmatpush2.msra.mxu0 0.0
  %156 = vmatprep.subr.mxu0 0.0
  %157 = vmatpush2.msra.mxu0 0.0
  %158 = vmatprep.subr.mxu0 0.0
  %159 = vmatpush2.msra.mxu0 0.0
  %160 = vmatprep.subr.mxu0 0.0
  %161 = vmatpush2.msra.mxu0 0.0
  %162 = vmatprep.subr.mxu0 0.0
  %163 = vmatpush2.msra.mxu0 0.0
  %164 = vmatprep.mubr.f32.mxu0 0.0
  %165 = vmatmul.mubr.f32.gmra.mxu0 %v20
  %v166 = vpop.f32.mrf.mxu0
  %v167 = vadd.f32 0.0, %v166
  %v168 = vpop.f32.mrf.mxu0
  %169 = vmatprep.mubr.f32.mxu0 0.0
  %170 = vmatmul.mubr.f32.gmra.mxu0 %v21
  %v171 = vpop.f32.mrf.mxu0
  %v172 = vadd.f32 0.0, %v171
  %v173 = vpop.f32.mrf.mxu0
  %174 = vmatprep.mubr.f32.mxu0 0.0
  %175 = vmatmul.mubr.f32.gmra.mxu0 %v22
  %v176 = vpop.f32.mrf.mxu0
  %v177 = vadd.f32 0.0, %v176
  %v178 = vpop.f32.mrf.mxu0
  %179 = vmatprep.mubr.f32.mxu0 0.0
  %180 = vmatmul.mubr.f32.gmra.mxu0 %v23
  %v181 = vpop.f32.mrf.mxu0
  %v182 = vadd.f32 0.0, %v181
  %v183 = vpop.f32.mrf.mxu0
  %184 = vmatprep.mubr.f32.mxu0 0.0
  %185 = vmatmul.mubr.f32.gmra.mxu0 %v24
  %v186 = vpop.f32.mrf.mxu0
  %v187 = vadd.f32 0.0, %v186
  %v188 = vpop.f32.mrf.mxu0
  %189 = vmatprep.mubr.f32.mxu0 0.0
  %190 = vmatmul.mubr.f32.gmra.mxu0 %v25
  %v191 = vpop.f32.mrf.mxu0
  %v192 = vadd.f32 0.0, %v191
  %v193 = vpop.f32.mrf.mxu0
  %194 = vmatprep.mubr.f32.mxu0 0.0
  %195 = vmatmul.mubr.f32.gmra.mxu0 %v26
  %v196 = vpop.f32.mrf.mxu0
  %v197 = vadd.f32 0.0, %v196
  %v198 = vpop.f32.mrf.mxu0
  %199 = vmatprep.mubr.f32.mxu0 0.0
  %200 = vmatmul.mubr.f32.gmra.mxu0 %v27
  %v201 = vpop.f32.mrf.mxu0
  %v202 = vadd.f32 0.0, %v201
  %v203 = vpop.f32.mrf.mxu0
  %204 = vmatprep.mubr.f32.mxu0 0.0
  %205 = vmatmul.mubr.f32.gmra.mxu0 %v28
  %v206 = vpop.f32.mrf.mxu0
  %v207 = vadd.f32 0.0, %v206
  %v208 = vpop.f32.mrf.mxu0
  %209 = vmatprep.mubr.f32.mxu0 0.0
  %210 = vmatmul.mubr.f32.gmra.mxu0 %v29
  %v211 = vpop.f32.mrf.mxu0
  %v212 = vadd.f32 0.0, %v211
  %v213 = vpop.f32.mrf.mxu0
  %214 = vmatprep.mubr.f32.mxu0 0.0
  %215 = vmatmul.mubr.f32.gmra.mxu0 %v30
  %v216 = vpop.f32.mrf.mxu0
  %v217 = vadd.f32 0.0, %v216
  %v218 = vpop.f32.mrf.mxu0
  %219 = vmatprep.mubr.f32.mxu0 0.0
  %220 = vmatmul.mubr.f32.gmra.mxu0 %v31
  %v221 = vpop.f32.mrf.mxu0
  %v222 = vadd.f32 0.0, %v221
  %v223 = vpop.f32.mrf.mxu0
  %224 = vmatprep.mubr.f32.mxu0 0.0
  %225 = vmatmul.mubr.f32.gmra.mxu0 %v32
  %v226 = vpop.f32.mrf.mxu0
  %v227 = vadd.f32 0.0, %v226
  %v228 = vpop.f32.mrf.mxu0
  %229 = vmatprep.mubr.f32.mxu0 0.0
  %230 = vmatmul.mubr.f32.gmra.mxu0 %v33
  %v231 = vpop.f32.mrf.mxu0
  %v232 = vadd.f32 0.0, %v231
  %v233 = vpop.f32.mrf.mxu0
  %234 = vmatprep.mubr.f32.mxu0 0.0
  %235 = vmatmul.mubr.f32.gmra.mxu0 %v34
  %v236 = vpop.f32.mrf.mxu0
  %v237 = vadd.f32 0.0, %v236
  %v238 = vpop.f32.mrf.mxu0
  %239 = vmatprep.mubr.f32.mxu0 0.0
  %240 = vmatmul.mubr.f32.gmra.mxu0 %v35
  %v241 = vpop.f32.mrf.mxu0
  %v242 = vadd.f32 0.0, %v241
  %v243 = vpop.f32.mrf.mxu0
  %244 = vmatprep.mubr.f32.mxu0 0.0
  %245 = vmatmul.mubr.f32.gmra.mxu0 %v36
  %v246 = vpop.f32.mrf.mxu0
  %v247 = vadd.f32 0.0, %v246
  %v248 = vpop.f32.mrf.mxu0
  %249 = vmatprep.mubr.f32.mxu0 0.0
  %250 = vmatmul.mubr.f32.gmra.mxu0 %v37
  %v251 = vpop.f32.mrf.mxu0
  %v252 = vadd.f32 0.0, %v251
  %v253 = vpop.f32.mrf.mxu0
  %254 = vmatprep.mubr.f32.mxu0 0.0
  %255 = vmatmul.mubr.f32.gmra.mxu0 %v38
  %v256 = vpop.f32.mrf.mxu0
  %v257 = vadd.f32 0.0, %v256
  %v258 = vpop.f32.mrf.mxu0
  %259 = vmatprep.mubr.f32.mxu0 0.0
  %260 = vmatmul.mubr.f32.gmra.mxu0 %v39
  %v261 = vpop.f32.mrf.mxu0
  %v262 = vadd.f32 0.0, %v261
  %v263 = vpop.f32.mrf.mxu0
  %264 = vmatprep.mubr.f32.mxu0 0.0
  %265 = vmatmul.mubr.f32.gmra.mxu0 %v40
  %v266 = vpop.f32.mrf.mxu0
  %v267 = vadd.f32 0.0, %v266
  %v268 = vpop.f32.mrf.mxu0
  %269 = vmatprep.mubr.f32.mxu0 0.0
  %270 = vmatmul.mubr.f32.gmra.mxu0 %v41
  %v271 = vpop.f32.mrf.mxu0
  %v272 = vadd.f32 0.0, %v271
  %v273 = vpop.f32.mrf.mxu0
  %274 = vmatprep.mubr.f32.mxu0 0.0
  %275 = vmatmul.mubr.f32.gmra.mxu0 %v42
  %v276 = vpop.f32.mrf.mxu0
  %v277 = vadd.f32 0.0, %v276
  %v278 = vpop.f32.mrf.mxu0
  %279 = vmatprep.mubr.f32.mxu0 0.0
  %280 = vmatmul.mubr.f32.gmra.mxu0 %v43
  %v281 = vpop.f32.mrf.mxu0
  %v282 = vadd.f32 0.0, %v281
  %v283 = vpop.f32.mrf.mxu0
  %284 = vmatprep.mubr.f32.mxu0 0.0
  %285 = vmatmul.mubr.f32.gmra.mxu0 %v44
  %v286 = vpop.f32.mrf.mxu0
  %v287 = vadd.f32 0.0, %v286
  %v288 = vpop.f32.mrf.mxu0
  %289 = vmatprep.mubr.f32.mxu0 0.0
  %290 = vmatmul.mubr.f32.gmra.mxu0 %v45
  %v291 = vpop.f32.mrf.mxu0
  %v292 = vadd.f32 0.0, %v291
  %v293 = vpop.f32.mrf.mxu0
  %294 = vmatprep.mubr.f32.mxu0 0.0
  %295 = vmatmul.mubr.f32.gmra.mxu0 %v46
  %v296 = vpop.f32.mrf.mxu0
  %v297 = vadd.f32 0.0, %v296
  %v298 = vpop.f32.mrf.mxu0
  %299 = vmatprep.mubr.f32.mxu0 0.0
  %300 = vmatmul.mubr.f32.gmra.mxu0 %v47
  %v301 = vpop.f32.mrf.mxu0
  %v302 = vadd.f32 0.0, %v301
  %v303 = vpop.f32.mrf.mxu0
  %304 = vmatprep.mubr.f32.mxu0 0.0
  %305 = vmatmul.mubr.f32.gmra.mxu0 %v48
  %v306 = vpop.f32.mrf.mxu0
  %v307 = vadd.f32 0.0, %v306
  %v308 = vpop.f32.mrf.mxu0
  %309 = vmatprep.mubr.f32.mxu0 0.0
  %310 = vmatmul.mubr.f32.gmra.mxu0 %v49
  %v311 = vpop.f32.mrf.mxu0
  %v312 = vadd.f32 0.0, %v311
  %v313 = vpop.f32.mrf.mxu0
  %314 = vmatprep.mubr.f32.mxu0 0.0
  %315 = vmatmul.mubr.f32.gmra.mxu0 %v50
  %v316 = vpop.f32.mrf.mxu0
  %v317 = vadd.f32 0.0, %v316
  %v318 = vpop.f32.mrf.mxu0
  %319 = vmatprep.mubr.f32.mxu0 0.0
  %320 = vmatmul.mubr.f32.gmra.mxu0 %v51
  %v321 = vpop.f32.mrf.mxu0
  %v322 = vadd.f32 0.0, %v321
  %v323 = vpop.f32.mrf.mxu0
  %324 = vmatprep.mubr.f32.mxu0 0.0
  %325 = vmatmul.mubr.f32.gmra.mxu0 %v52
  %v326 = vpop.f32.mrf.mxu0
  %v327 = vadd.f32 0.0, %v326
  %v328 = vpop.f32.mrf.mxu0
  %329 = vmatprep.mubr.f32.mxu0 0.0
  %330 = vmatmul.mubr.f32.gmra.mxu0 %v53
  %v331 = vpop.f32.mrf.mxu0
  %v332 = vadd.f32 0.0, %v331
  %v333 = vpop.f32.mrf.mxu0
  %334 = vmatprep.mubr.f32.mxu0 0.0
  %335 = vmatmul.mubr.f32.gmra.mxu0 %v54
  %v336 = vpop.f32.mrf.mxu0
  %v337 = vadd.f32 0.0, %v336
  %v338 = vpop.f32.mrf.mxu0
  %339 = vmatprep.mubr.f32.mxu0 0.0
  %340 = vmatmul.mubr.f32.gmra.mxu0 %v55
  %v341 = vpop.f32.mrf.mxu0
  %v342 = vadd.f32 0.0, %v341
  %v343 = vpop.f32.mrf.mxu0
  %344 = vmatprep.mubr.f32.mxu0 0.0
  %345 = vmatmul.mubr.f32.gmra.mxu0 %v56
  %v346 = vpop.f32.mrf.mxu0
  %v347 = vadd.f32 0.0, %v346
  %v348 = vpop.f32.mrf.mxu0
  %349 = vmatprep.mubr.f32.mxu0 0.0
  %350 = vmatmul.mubr.f32.gmra.mxu0 %v57
  %v351 = vpop.f32.mrf.mxu0
  %v352 = vadd.f32 0.0, %v351
  %v353 = vpop.f32.mrf.mxu0
  %354 = vmatprep.mubr.f32.mxu0 0.0
  %355 = vmatmul.mubr.f32.gmra.mxu0 %v58
  %v356 = vpop.f32.mrf.mxu0
  %v357 = vadd.f32 0.0, %v356
  %v358 = vpop.f32.mrf.mxu0
  %359 = vmatprep.mubr.f32.mxu0 0.0
  %360 = vmatmul.mubr.f32.gmra.mxu0 %v59
  %v361 = vpop.f32.mrf.mxu0
  %v362 = vadd.f32 0.0, %v361
  %v363 = vpop.f32.mrf.mxu0
  %364 = vmatprep.mubr.f32.mxu0 0.0
  %365 = vmatmul.mubr.f32.gmra.mxu0 %v60
  %v366 = vpop.f32.mrf.mxu0
  %v367 = vadd.f32 0.0, %v366
  %v368 = vpop.f32.mrf.mxu0
  %369 = vmatprep.mubr.f32.mxu0 0.0
  %370 = vmatmul.mubr.f32.gmra.mxu0 %v61
  %v371 = vpop.f32.mrf.mxu0
  %v372 = vadd.f32 0.0, %v371
  %v373 = vpop.f32.mrf.mxu0
  %374 = vmatprep.mubr.f32.mxu0 0.0
  %375 = vmatmul.mubr.f32.gmra.mxu0 %v62
  %v376 = vpop.f32.mrf.mxu0
  %v377 = vadd.f32 0.0, %v376
  %v378 = vpop.f32.mrf.mxu0
  %379 = vmatprep.mubr.f32.mxu0 0.0
  %380 = vmatmul.mubr.f32.gmra.mxu0 %v63
  %v381 = vpop.f32.mrf.mxu0
  %v382 = vadd.f32 0.0, %v381
  %v383 = vpop.f32.mrf.mxu0
  %384 = vmatprep.mubr.f32.mxu0 0.0
  %385 = vmatmul.mubr.f32.gmra.mxu0 %v64
  %v386 = vpop.f32.mrf.mxu0
  %v387 = vadd.f32 0.0, %v386
  %v388 = vpop.f32.mrf.mxu0
  %389 = vmatprep.mubr.f32.mxu0 0.0
  %390 = vmatmul.mubr.f32.gmra.mxu0 %v65
  %v391 = vpop.f32.mrf.mxu0
  %v392 = vadd.f32 0.0, %v391
  %v393 = vpop.f32.mrf.mxu0
  %394 = vmatprep.mubr.f32.mxu0 0.0
  %395 = vmatmul.mubr.f32.gmra.mxu0 %v66
  %v396 = vpop.f32.mrf.mxu0
  %v397 = vadd.f32 0.0, %v396
  %v398 = vpop.f32.mrf.mxu0
  %399 = vmatprep.mubr.f32.mxu0 0.0
  %400 = vmatmul.mubr.f32.gmra.mxu0 %v67
  %v401 = vpop.f32.mrf.mxu0
  %v402 = vadd.f32 0.0, %v401
  %v403 = vpop.f32.mrf.mxu0
  %404 = vmatprep.mubr.f32.mxu0 0.0
  %405 = vmatmul.mubr.f32.gmra.mxu0 %v68
  %v406 = vpop.f32.mrf.mxu0
  %v407 = vadd.f32 0.0, %v406
  %v408 = vpop.f32.mrf.mxu0
  %409 = vmatprep.mubr.f32.mxu0 0.0
  %410 = vmatmul.mubr.f32.gmra.mxu0 %v69
  %v411 = vpop.f32.mrf.mxu0
  %v412 = vadd.f32 0.0, %v411
  %v413 = vpop.f32.mrf.mxu0
  %414 = vmatprep.mubr.f32.mxu0 0.0
  %415 = vmatmul.mubr.f32.gmra.mxu0 %v70
  %v416 = vpop.f32.mrf.mxu0
  %v417 = vadd.f32 0.0, %v416
  %v418 = vpop.f32.mrf.mxu0
  %419 = vmatprep.mubr.f32.mxu0 0.0
  %420 = vmatmul.mubr.f32.gmra.mxu0 %v71
  %v421 = vpop.f32.mrf.mxu0
  %v422 = vadd.f32 0.0, %v421
  %v423 = vpop.f32.mrf.mxu0
  %424 = vmatprep.mubr.f32.mxu0 0.0
  %425 = vmatmul.mubr.f32.gmra.mxu0 %v72
  %v426 = vpop.f32.mrf.mxu0
  %v427 = vadd.f32 0.0, %v426
  %v428 = vpop.f32.mrf.mxu0
  %429 = vmatprep.mubr.f32.mxu0 0.0
  %430 = vmatmul.mubr.f32.gmra.mxu0 %v73
  %v431 = vpop.f32.mrf.mxu0
  %v432 = vadd.f32 0.0, %v431
  %v433 = vpop.f32.mrf.mxu0
  %434 = vmatprep.mubr.f32.mxu0 0.0
  %435 = vmatmul.mubr.f32.gmra.mxu0 %v74
  %v436 = vpop.f32.mrf.mxu0
  %v437 = vadd.f32 0.0, %v436
  %v438 = vpop.f32.mrf.mxu0
  %439 = vmatprep.mubr.f32.mxu0 0.0
  %440 = vmatmul.mubr.f32.gmra.mxu0 %v75
  %v441 = vpop.f32.mrf.mxu0
  %v442 = vadd.f32 0.0, %v441
  %v443 = vpop.f32.mrf.mxu0
  %444 = vmatprep.mubr.f32.mxu0 0.0
  %445 = vmatmul.mubr.f32.gmra.mxu0 %v76
  %v446 = vpop.f32.mrf.mxu0
  %v447 = vadd.f32 0.0, %v446
  %v448 = vpop.f32.mrf.mxu0
  %449 = vmatprep.mubr.f32.mxu0 0.0
  %450 = vmatmul.mubr.f32.gmra.mxu0 %v77
  %v451 = vpop.f32.mrf.mxu0
  %v452 = vadd.f32 0.0, %v451
  %v453 = vpop.f32.mrf.mxu0
  %454 = vmatprep.mubr.f32.mxu0 0.0
  %455 = vmatmul.mubr.f32.gmra.mxu0 %v78
  %v456 = vpop.f32.mrf.mxu0
  %v457 = vadd.f32 0.0, %v456
  %v458 = vpop.f32.mrf.mxu0
  %459 = vmatprep.mubr.f32.mxu0 0.0
  %460 = vmatmul.mubr.f32.gmra.mxu0 %v79
  %v461 = vpop.f32.mrf.mxu0
  %v462 = vadd.f32 0.0, %v461
  %v463 = vpop.f32.mrf.mxu0
  %464 = vmatprep.mubr.f32.mxu0 0.0
  %465 = vmatmul.mubr.f32.gmra.mxu0 %v80
  %v466 = vpop.f32.mrf.mxu0
  %v467 = vadd.f32 0.0, %v466
  %v468 = vpop.f32.mrf.mxu0
  %469 = vmatprep.mubr.f32.mxu0 0.0
  %470 = vmatmul.mubr.f32.gmra.mxu0 %v81
  %v471 = vpop.f32.mrf.mxu0
  %v472 = vadd.f32 0.0, %v471
  %v473 = vpop.f32.mrf.mxu0
  %474 = vmatprep.mubr.f32.mxu0 0.0
  %475 = vmatmul.mubr.f32.gmra.mxu0 %v82
  %v476 = vpop.f32.mrf.mxu0
  %v477 = vadd.f32 0.0, %v476
  %v478 = vpop.f32.mrf.mxu0
  %479 = vmatprep.mubr.f32.mxu0 0.0
  %480 = vmatmul.mubr.f32.gmra.mxu0 %v83
  %v481 = vpop.f32.mrf.mxu0
  %v482 = vadd.f32 0.0, %v481
  %v483 = vpop.f32.mrf.mxu0
  %484 = vdwg.mxu0
  %485 = vst [vmem:[%s2] sm:$0xff] %v167
  %486 = vst [vmem:[%s2 + $0x8] sm:$0xff] %v172
  %487 = vst [vmem:[%s2 + $0x10] sm:$0xff] %v177
  %488 = vst [vmem:[%s2 + $0x18] sm:$0xff] %v182
  %489 = vst [vmem:[%s2 + $0x20] sm:$0xff] %v187
  %490 = vst [vmem:[%s2 + $0x28] sm:$0xff] %v192
  %491 = vst [vmem:[%s2 + $0x30] sm:$0xff] %v197
  %492 = vst [vmem:[%s2 + $0x38] sm:$0xff] %v202
  %493 = vst [vmem:[%s2 + $0x40] sm:$0xff] %v207
  %494 = vst [vmem:[%s2 + $0x48] sm:$0xff] %v212
  %495 = vst [vmem:[%s2 + $0x50] sm:$0xff] %v217
  %496 = vst [vmem:[%s2 + $0x58] sm:$0xff] %v222
  %497 = vst [vmem:[%s2 + $0x60] sm:$0xff] %v227
  %498 = vst [vmem:[%s2 + $0x68] sm:$0xff] %v232
  %499 = vst [vmem:[%s2 + $0x70] sm:$0xff] %v237
  %500 = vst [vmem:[%s2 + $0x78] sm:$0xff] %v242
  %501 = vst [vmem:[%s2 + $0x80] sm:$0xff] %v247
  %502 = vst [vmem:[%s2 + $0x88] sm:$0xff] %v252
  %503 = vst [vmem:[%s2 + $0x90] sm:$0xff] %v257
  %504 = vst [vmem:[%s2 + $0x98] sm:$0xff] %v262
  %505 = vst [vmem:[%s2 + $0xa0] sm:$0xff] %v267
  %506 = vst [vmem:[%s2 + $0xa8] sm:$0xff] %v272
  %507 = vst [vmem:[%s2 + $0xb0] sm:$0xff] %v277
  %508 = vst [vmem:[%s2 + $0xb8] sm:$0xff] %v282
  %509 = vst [vmem:[%s2 + $0xc0] sm:$0xff] %v287
  %510 = vst [vmem:[%s2 + $0xc8] sm:$0xff] %v292
  %511 = vst [vmem:[%s2 + $0xd0] sm:$0xff] %v297
  %512 = vst [vmem:[%s2 + $0xd8] sm:$0xff] %v302
  %513 = vst [vmem:[%s2 + $0xe0] sm:$0xff] %v307
  %514 = vst [vmem:[%s2 + $0xe8] sm:$0xff] %v312
  %515 = vst [vmem:[%s2 + $0xf0] sm:$0xff] %v317
  %516 = vst [vmem:[%s2 + $0xf8] sm:$0xff] %v322
  %517 = vst [vmem:[%s2 + $0x100] sm:$0xff] %v327
  %518 = vst [vmem:[%s2 + $0x108] sm:$0xff] %v332
  %519 = vst [vmem:[%s2 + $0x110] sm:$0xff] %v337
  %520 = vst [vmem:[%s2 + $0x118] sm:$0xff] %v342
  %521 = vst [vmem:[%s2 + $0x120] sm:$0xff] %v347
  %522 = vst [vmem:[%s2 + $0x128] sm:$0xff] %v352
  %523 = vst [vmem:[%s2 + $0x130] sm:$0xff] %v357
  %524 = vst [vmem:[%s2 + $0x138] sm:$0xff] %v362
  %525 = vst [vmem:[%s2 + $0x140] sm:$0xff] %v367
  %526 = vst [vmem:[%s2 + $0x148] sm:$0xff] %v372
  %527 = vst [vmem:[%s2 + $0x150] sm:$0xff] %v377
  %528 = vst [vmem:[%s2 + $0x158] sm:$0xff] %v382
  %529 = vst [vmem:[%s2 + $0x160] sm:$0xff] %v387
  %530 = vst [vmem:[%s2 + $0x168] sm:$0xff] %v392
  %531 = vst [vmem:[%s2 + $0x170] sm:$0xff] %v397
  %532 = vst [vmem:[%s2 + $0x178] sm:$0xff] %v402
  %533 = vst [vmem:[%s2 + $0x180] sm:$0xff] %v407
  %534 = vst [vmem:[%s2 + $0x188] sm:$0xff] %v412
  %535 = vst [vmem:[%s2 + $0x190] sm:$0xff] %v417
  %536 = vst [vmem:[%s2 + $0x198] sm:$0xff] %v422
  %537 = vst [vmem:[%s2 + $0x1a0] sm:$0xff] %v427
  %538 = vst [vmem:[%s2 + $0x1a8] sm:$0xff] %v432
  %539 = vst [vmem:[%s2 + $0x1b0] sm:$0xff] %v437
  %540 = vst [vmem:[%s2 + $0x1b8] sm:$0xff] %v442
  %541 = vst [vmem:[%s2 + $0x1c0] sm:$0xff] %v447
  %542 = vst [vmem:[%s2 + $0x1c8] sm:$0xff] %v452
  %543 = vst [vmem:[%s2 + $0x1d0] sm:$0xff] %v457
  %544 = vst [vmem:[%s2 + $0x1d8] sm:$0xff] %v462
  %545 = vst [vmem:[%s2 + $0x1e0] sm:$0xff] %v467
  %546 = vst [vmem:[%s2 + $0x1e8] sm:$0xff] %v472
  %547 = vst [vmem:[%s2 + $0x1f0] sm:$0xff] %v477
  %548 = vst [vmem:[%s2 + $0x1f8] sm:$0xff] %v482
  %v549 = vld [vmem:[%s3] sm:$0x1]
  %v550 = vadd.f32 %v167, %v172
  %v551 = vadd.f32 %v550, %v177
  %v552 = vadd.f32 %v551, %v182
  %v553 = vadd.f32 %v552, %v187
  %v554 = vadd.f32 %v553, %v192
  %v555 = vadd.f32 %v554, %v197
  %v556 = vadd.f32 %v555, %v202
  %v557 = vadd.f32 %v556, %v207
  %v558 = vadd.f32 %v557, %v212
  %v559 = vadd.f32 %v558, %v217
  %v560 = vadd.f32 %v559, %v222
  %v561 = vadd.f32 %v560, %v227
  %v562 = vadd.f32 %v561, %v232
  %v563 = vadd.f32 %v562, %v237
  %v564 = vadd.f32 %v563, %v242
  %v565 = vadd.f32 %v564, %v247
  %v566 = vadd.f32 %v565, %v252
  %v567 = vadd.f32 %v566, %v257
  %v568 = vadd.f32 %v567, %v262
  %v569 = vadd.f32 %v568, %v267
  %v570 = vadd.f32 %v569, %v272
  %v571 = vadd.f32 %v570, %v277
  %v572 = vadd.f32 %v571, %v282
  %v573 = vadd.f32 %v572, %v287
  %v574 = vadd.f32 %v573, %v292
  %v575 = vadd.f32 %v574, %v297
  %v576 = vadd.f32 %v575, %v302
  %v577 = vadd.f32 %v576, %v307
  %v578 = vadd.f32 %v577, %v312
  %v579 = vadd.f32 %v578, %v317
  %v580 = vadd.f32 %v579, %v322
  %v581 = vadd.f32 %v580, %v327
  %v582 = vadd.f32 %v581, %v332
  %v583 = vadd.f32 %v582, %v337
  %v584 = vadd.f32 %v583, %v342
  %v585 = vadd.f32 %v584, %v347
  %v586 = vadd.f32 %v585, %v352
  %v587 = vadd.f32 %v586, %v357
  %v588 = vadd.f32 %v587, %v362
  %v589 = vadd.f32 %v588, %v367
  %v590 = vadd.f32 %v589, %v372
  %v591 = vadd.f32 %v590, %v377
  %v592 = vadd.f32 %v591, %v382
  %v593 = vadd.f32 %v592, %v387
  %v594 = vadd.f32 %v593, %v392
  %v595 = vadd.f32 %v594, %v397
  %v596 = vadd.f32 %v595, %v402
  %v597 = vadd.f32 %v596, %v407
  %v598 = vadd.f32 %v597, %v412
  %v599 = vadd.f32 %v598, %v417
  %v600 = vadd.f32 %v599, %v422
  %v601 = vadd.f32 %v600, %v427
  %v602 = vadd.f32 %v601, %v432
  %v603 = vadd.f32 %v602, %v437
  %v604 = vadd.f32 %v603, %v442
  %v605 = vadd.f32 %v604, %v447
  %v606 = vadd.f32 %v605, %v452
  %v607 = vadd.f32 %v606, %v457
  %v608 = vadd.f32 %v607, %v462
  %v609 = vadd.f32 %v608, %v467
  %v610 = vadd.f32 %v609, %v472
  %v611 = vadd.f32 %v610, %v477
  %v612 = vadd.f32 %v611, %v482
  %v613 = vrot.slane %v612, 4
  %v614 = vadd.f32 %v612, %v613
  %v615 = vrot.slane %v614, 2
  %v616 = vadd.f32 %v614, %v615
  %v617 = vrot.slane %v616, 1
  %v618 = vadd.f32 %v616, %v617
  %v619 = vadd.f32 %v549, %v618
  %620 = vst [vmem:[%s3] sm:$0x1] %v619
  %v621 = vld [vmem:[%s4] sm:$0x1]
  %v622 = vmul.f32 %v167, %v167
  %v623 = vmul.f32 %v172, %v172
  %v624 = vmul.f32 %v177, %v177
  %v625 = vmul.f32 %v182, %v182
  %v626 = vmul.f32 %v187, %v187
  %v627 = vmul.f32 %v192, %v192
  %v628 = vmul.f32 %v197, %v197
  %v629 = vmul.f32 %v202, %v202
  %v630 = vmul.f32 %v207, %v207
  %v631 = vmul.f32 %v212, %v212
  %v632 = vmul.f32 %v217, %v217
  %v633 = vmul.f32 %v222, %v222
  %v634 = vmul.f32 %v227, %v227
  %v635 = vmul.f32 %v232, %v232
  %v636 = vmul.f32 %v237, %v237
  %v637 = vmul.f32 %v242, %v242
  %v638 = vmul.f32 %v247, %v247
  %v639 = vmul.f32 %v252, %v252
  %v640 = vmul.f32 %v257, %v257
  %v641 = vmul.f32 %v262, %v262
  %v642 = vmul.f32 %v267, %v267
  %v643 = vmul.f32 %v272, %v272
  %v644 = vmul.f32 %v277, %v277
  %v645 = vmul.f32 %v282, %v282
  %v646 = vmul.f32 %v287, %v287
  %v647 = vmul.f32 %v292, %v292
  %v648 = vmul.f32 %v297, %v297
  %v649 = vmul.f32 %v302, %v302
  %v650 = vmul.f32 %v307, %v307
  %v651 = vmul.f32 %v312, %v312
  %v652 = vmul.f32 %v317, %v317
  %v653 = vmul.f32 %v322, %v322
  %v654 = vmul.f32 %v327, %v327
  %v655 = vmul.f32 %v332, %v332
  %v656 = vmul.f32 %v337, %v337
  %v657 = vmul.f32 %v342, %v342
  %v658 = vmul.f32 %v347, %v347
  %v659 = vmul.f32 %v352, %v352
  %v660 = vmul.f32 %v357, %v357
  %v661 = vmul.f32 %v362, %v362
  %v662 = vmul.f32 %v367, %v367
  %v663 = vmul.f32 %v372, %v372
  %v664 = vmul.f32 %v377, %v377
  %v665 = vmul.f32 %v382, %v382
  %v666 = vmul.f32 %v387, %v387
  %v667 = vmul.f32 %v392, %v392
  %v668 = vmul.f32 %v397, %v397
  %v669 = vmul.f32 %v402, %v402
  %v670 = vmul.f32 %v407, %v407
  %v671 = vmul.f32 %v412, %v412
  %v672 = vmul.f32 %v417, %v417
  %v673 = vmul.f32 %v422, %v422
  %v674 = vmul.f32 %v427, %v427
  %v675 = vmul.f32 %v432, %v432
  %v676 = vmul.f32 %v437, %v437
  %v677 = vmul.f32 %v442, %v442
  %v678 = vmul.f32 %v447, %v447
  %v679 = vmul.f32 %v452, %v452
  %v680 = vmul.f32 %v457, %v457
  %v681 = vmul.f32 %v462, %v462
  %v682 = vmul.f32 %v467, %v467
  %v683 = vmul.f32 %v472, %v472
  %v684 = vmul.f32 %v477, %v477
  %v685 = vmul.f32 %v482, %v482
  %v686 = vadd.f32 %v622, %v623
  %v687 = vadd.f32 %v686, %v624
  %v688 = vadd.f32 %v687, %v625
  %v689 = vadd.f32 %v688, %v626
  %v690 = vadd.f32 %v689, %v627
  %v691 = vadd.f32 %v690, %v628
  %v692 = vadd.f32 %v691, %v629
  %v693 = vadd.f32 %v692, %v630
  %v694 = vadd.f32 %v693, %v631
  %v695 = vadd.f32 %v694, %v632
  %v696 = vadd.f32 %v695, %v633
  %v697 = vadd.f32 %v696, %v634
  %v698 = vadd.f32 %v697, %v635
  %v699 = vadd.f32 %v698, %v636
  %v700 = vadd.f32 %v699, %v637
  %v701 = vadd.f32 %v700, %v638
  %v702 = vadd.f32 %v701, %v639
  %v703 = vadd.f32 %v702, %v640
  %v704 = vadd.f32 %v703, %v641
  %v705 = vadd.f32 %v704, %v642
  %v706 = vadd.f32 %v705, %v643
  %v707 = vadd.f32 %v706, %v644
  %v708 = vadd.f32 %v707, %v645
  %v709 = vadd.f32 %v708, %v646
  %v710 = vadd.f32 %v709, %v647
  %v711 = vadd.f32 %v710, %v648
  %v712 = vadd.f32 %v711, %v649
  %v713 = vadd.f32 %v712, %v650
  %v714 = vadd.f32 %v713, %v651
  %v715 = vadd.f32 %v714, %v652
  %v716 = vadd.f32 %v715, %v653
  %v717 = vadd.f32 %v716, %v654
  %v718 = vadd.f32 %v717, %v655
  %v719 = vadd.f32 %v718, %v656
  %v720 = vadd.f32 %v719, %v657
  %v721 = vadd.f32 %v720, %v658
  %v722 = vadd.f32 %v721, %v659
  %v723 = vadd.f32 %v722, %v660
  %v724 = vadd.f32 %v723, %v661
  %v725 = vadd.f32 %v724, %v662
  %v726 = vadd.f32 %v725, %v663
  %v727 = vadd.f32 %v726, %v664
  %v728 = vadd.f32 %v727, %v665
  %v729 = vadd.f32 %v728, %v666
  %v730 = vadd.f32 %v729, %v667
  %v731 = vadd.f32 %v730, %v668
  %v732 = vadd.f32 %v731, %v669
  %v733 = vadd.f32 %v732, %v670
  %v734 = vadd.f32 %v733, %v671
  %v735 = vadd.f32 %v734, %v672
  %v736 = vadd.f32 %v735, %v673
  %v737 = vadd.f32 %v736, %v674
  %v738 = vadd.f32 %v737, %v675
  %v739 = vadd.f32 %v738, %v676
  %v740 = vadd.f32 %v739, %v677
  %v741 = vadd.f32 %v740, %v678
  %v742 = vadd.f32 %v741, %v679
  %v743 = vadd.f32 %v742, %v680
  %v744 = vadd.f32 %v743, %v681
  %v745 = vadd.f32 %v744, %v682
  %v746 = vadd.f32 %v745, %v683
  %v747 = vadd.f32 %v746, %v684
  %v748 = vadd.f32 %v747, %v685
  %v749 = vrot.slane %v748, 4
  %v750 = vadd.f32 %v748, %v749
  %v751 = vrot.slane %v750, 2
  %v752 = vadd.f32 %v750, %v751
  %v753 = vrot.slane %v752, 1
  %v754 = vadd.f32 %v752, %v753
  %v755 = vadd.f32 %v621, %v754
  %756 = vst [vmem:[%s4] sm:$0x1] %v755
  // Predicated region
  $region14: #{bottleneck_forward.4} parent=0 // pred_check
    _
  $region15: #{bottleneck_forward.4} parent=0 // pred_check_branch
    %758 = sbr.rel (0) target = $region17
  $region16: #{bottleneck_forward.4} parent=0 // pred_region
    _
  $region17: #{bottleneck_forward.4} parent=0 // pred_fallthru
    _
  // Predicated region
  $region18: #{bottleneck_forward.4} parent=0 // pred_check
    _
  $region19: #{bottleneck_forward.4} parent=0 // pred_check_branch
    %760 = sbr.rel (0) target = $region21
  $region20: #{bottleneck_forward.4} parent=0 // pred_region
    _
  $region21: #{bottleneck_forward.4} parent=0 // pred_fallthru
    _
  // Predicated region
  $region22: #{bottleneck_forward.4} parent=0 // pred_check
    _
  $region23: #{bottleneck_forward.4} parent=0 // pred_check_branch
    %762 = sbr.rel (0) target = $region25
  $region24: #{bottleneck_forward.4} parent=0 // pred_region
    _
  $region25: #{bottleneck_forward.4} parent=0 // pred_fallthru
    _
  // Predicated region
  $region26: #{bottleneck_forward.4} parent=0 // pred_check
    _
  $region27: #{bottleneck_forward.4} parent=0 // pred_check_branch
    %764 = sbr.rel (0) target = $region29
  $region28: #{bottleneck_forward.4} parent=0 // pred_region
    _
  $region29: #{bottleneck_forward.4} parent=0 // pred_fallthru
    _
  // Predicated region
  $region30: #{bottleneck_forward.4} parent=0 // pred_check
    _
  $region31: #{bottleneck_forward.4} parent=0 // pred_check_branch
    %766 = sbr.rel (0) target = $region33
  $region32: #{bottleneck_forward.4} parent=0 // pred_region
    _
  $region33: #{bottleneck_forward.4} parent=0 // pred_fallthru
    _
  // Predicated region
  $region34: #{bottleneck_forward.4} parent=0 // pred_check
    _
  $region35: #{bottleneck_forward.4} parent=0 // pred_check_branch
    %768 = sbr.rel (0) target = $region37
  $region36: #{bottleneck_forward.4} parent=0 // pred_region
    _
  $region37: #{bottleneck_forward.4} parent=0 // pred_fallthru
    _

// kernel: bottleneck_forward.5
$region0: #{bottleneck_forward.5}
  #allocation0 [shape = 'u32[]', space=smem, size = 0x4, offset = 0x4, fixed_abs, tag = 'smem constant byte address 0x4 - core index']
  #allocation1 [shape = 'u32[144,128]{1,0:T(1,128)}', space=vmem, size = 0x12000, scoped, tag = 'internal scratch']
  %s0 = inlined_call_operand.vmem [shape: f32[512,128], index: 0, kind: input, shape index: {}]
  %s1 = inlined_call_operand.vmem [shape: f32[1,128], index: 1, kind: input, shape index: {}]
  %s2 = inlined_call_operand.vmem [shape: f32[1,128], index: 2, kind: input, shape index: {}]
  %s3 = inlined_call_operand.vmem [shape: f32[128,128], index: 3, kind: input, shape index: {}]
  %s4 = inlined_call_operand.vmem [shape: f32[512,128], index: 4, kind: output, shape index: {0}]
  %s5 = inlined_call_operand.vmem [shape: f32[1,128], index: 5, kind: output, shape index: {1}]
  %s6 = inlined_call_operand.vmem [shape: f32[1,128], index: 6, kind: output, shape index: {2}]
  %7 = xla_tuple %s4, %s5, %s6
  %s8 = sld [smem:[#allocation0]]
  $region46: #{bottleneck_forward.5} parent=0
    _
  %s10 = ssub.s32 1, %s8
  %s11 = scalar_select 0, %s10, %s8
  // Predicated region
  $region2: #{bottleneck_forward.5} parent=0 // pred_check
    _
  $region3: #{bottleneck_forward.5} parent=0 // pred_check_branch
    %13 = sbr.rel (0) target = $region5
  $region4: #{bottleneck_forward.5} parent=0 // pred_region
    _
  $region5: #{bottleneck_forward.5} parent=0 // pred_fallthru
    _
  // Predicated region
  $region6: #{bottleneck_forward.5} parent=0 // pred_check
    _
  $region7: #{bottleneck_forward.5} parent=0 // pred_check_branch
    %15 = sbr.rel (0) target = $region9
  $region8: #{bottleneck_forward.5} parent=0 // pred_region
    _
  $region9: #{bottleneck_forward.5} parent=0 // pred_fallthru
    _
  // Predicated region
  $region10: #{bottleneck_forward.5} parent=0 // pred_check
    _
  $region11: #{bottleneck_forward.5} parent=0 // pred_check_branch
    %17 = sbr.rel (0) target = $region13
  $region12: #{bottleneck_forward.5} parent=0 // pred_region
    _
  $region13: #{bottleneck_forward.5} parent=0 // pred_fallthru
    _
  // Predicated region
  $region14: #{bottleneck_forward.5} parent=0 // pred_check
    _
  $region15: #{bottleneck_forward.5} parent=0 // pred_check_branch
    %19 = sbr.rel (0) target = $region17
  $region16: #{bottleneck_forward.5} parent=0 // pred_region
    _
  $region17: #{bottleneck_forward.5} parent=0 // pred_fallthru
    _
  %p20 = scmp.eq.s32.totalorder 0, 0
  // Predicated region
  $region18: #{bottleneck_forward.5} parent=0 // pred_check
    %p21 = pneg %p20
  $region19: #{bottleneck_forward.5} parent=0 // pred_check_branch
    %23 = sbr.rel (%p21) target = $region21
  $region20: #{bottleneck_forward.5} parent=0 // pred_region
    %24 = vst [vmem:[%s5] sm:$0x1] 0.0
    %25 = vst [vmem:[%s6] sm:$0x1] 0.0
  $region21: #{bottleneck_forward.5} parent=0 // pred_fallthru
    _
  %v26 = vld [vmem:[%s0] sm:$0xff]
  %v27 = vld [vmem:[%s0 + $0x8] sm:$0xff]
  %v28 = vld [vmem:[%s0 + $0x10] sm:$0xff]
  %v29 = vld [vmem:[%s0 + $0x18] sm:$0xff]
  %v30 = vld [vmem:[%s0 + $0x20] sm:$0xff]
  %v31 = vld [vmem:[%s0 + $0x28] sm:$0xff]
  %v32 = vld [vmem:[%s0 + $0x30] sm:$0xff]
  %v33 = vld [vmem:[%s0 + $0x38] sm:$0xff]
  %v34 = vld [vmem:[%s0 + $0x40] sm:$0xff]
  %v35 = vld [vmem:[%s0 + $0x48] sm:$0xff]
  %v36 = vld [vmem:[%s0 + $0x50] sm:$0xff]
  %v37 = vld [vmem:[%s0 + $0x58] sm:$0xff]
  %v38 = vld [vmem:[%s0 + $0x60] sm:$0xff]
  %v39 = vld [vmem:[%s0 + $0x68] sm:$0xff]
  %v40 = vld [vmem:[%s0 + $0x70] sm:$0xff]
  %v41 = vld [vmem:[%s0 + $0x78] sm:$0xff]
  %v42 = vld [vmem:[%s0 + $0x80] sm:$0xff]
  %v43 = vld [vmem:[%s0 + $0x88] sm:$0xff]
  %v44 = vld [vmem:[%s0 + $0x90] sm:$0xff]
  %v45 = vld [vmem:[%s0 + $0x98] sm:$0xff]
  %v46 = vld [vmem:[%s0 + $0xa0] sm:$0xff]
  %v47 = vld [vmem:[%s0 + $0xa8] sm:$0xff]
  %v48 = vld [vmem:[%s0 + $0xb0] sm:$0xff]
  %v49 = vld [vmem:[%s0 + $0xb8] sm:$0xff]
  %v50 = vld [vmem:[%s0 + $0xc0] sm:$0xff]
  %v51 = vld [vmem:[%s0 + $0xc8] sm:$0xff]
  %v52 = vld [vmem:[%s0 + $0xd0] sm:$0xff]
  %v53 = vld [vmem:[%s0 + $0xd8] sm:$0xff]
  %v54 = vld [vmem:[%s0 + $0xe0] sm:$0xff]
  %v55 = vld [vmem:[%s0 + $0xe8] sm:$0xff]
  %v56 = vld [vmem:[%s0 + $0xf0] sm:$0xff]
  %v57 = vld [vmem:[%s0 + $0xf8] sm:$0xff]
  %v58 = vld [vmem:[%s0 + $0x100] sm:$0xff]
  %v59 = vld [vmem:[%s0 + $0x108] sm:$0xff]
  %v60 = vld [vmem:[%s0 + $0x110] sm:$0xff]
  %v61 = vld [vmem:[%s0 + $0x118] sm:$0xff]
  %v62 = vld [vmem:[%s0 + $0x120] sm:$0xff]
  %v63 = vld [vmem:[%s0 + $0x128] sm:$0xff]
  %v64 = vld [vmem:[%s0 + $0x130] sm:$0xff]
  %v65 = vld [vmem:[%s0 + $0x138] sm:$0xff]
  %v66 = vld [vmem:[%s0 + $0x140] sm:$0xff]
  %v67 = vld [vmem:[%s0 + $0x148] sm:$0xff]
  %v68 = vld [vmem:[%s0 + $0x150] sm:$0xff]
  %v69 = vld [vmem:[%s0 + $0x158] sm:$0xff]
  %v70 = vld [vmem:[%s0 + $0x160] sm:$0xff]
  %v71 = vld [vmem:[%s0 + $0x168] sm:$0xff]
  %v72 = vld [vmem:[%s0 + $0x170] sm:$0xff]
  %v73 = vld [vmem:[%s0 + $0x178] sm:$0xff]
  %v74 = vld [vmem:[%s0 + $0x180] sm:$0xff]
  %v75 = vld [vmem:[%s0 + $0x188] sm:$0xff]
  %v76 = vld [vmem:[%s0 + $0x190] sm:$0xff]
  %v77 = vld [vmem:[%s0 + $0x198] sm:$0xff]
  %v78 = vld [vmem:[%s0 + $0x1a0] sm:$0xff]
  %v79 = vld [vmem:[%s0 + $0x1a8] sm:$0xff]
  %v80 = vld [vmem:[%s0 + $0x1b0] sm:$0xff]
  %v81 = vld [vmem:[%s0 + $0x1b8] sm:$0xff]
  %v82 = vld [vmem:[%s0 + $0x1c0] sm:$0xff]
  %v83 = vld [vmem:[%s0 + $0x1c8] sm:$0xff]
  %v84 = vld [vmem:[%s0 + $0x1d0] sm:$0xff]
  %v85 = vld [vmem:[%s0 + $0x1d8] sm:$0xff]
  %v86 = vld [vmem:[%s0 + $0x1e0] sm:$0xff]
  %v87 = vld [vmem:[%s0 + $0x1e8] sm:$0xff]
  %v88 = vld [vmem:[%s0 + $0x1f0] sm:$0xff]
  %v89 = vld [vmem:[%s0 + $0x1f8] sm:$0xff]
  %v90 = vld [vmem:[%s1] sm:$0x1]
  %v92 = vlaneseq
  %v93 = vshrl.u32 %v92, 7
  %v94 = vsub.s32 0, %v93
  %v95 = vrot.slane %v90, %v94
  %v97 = vmul.f32 %v26, %v95
  %v98 = vmul.f32 %v27, %v95
  %v99 = vmul.f32 %v28, %v95
  %v100 = vmul.f32 %v29, %v95
  %v101 = vmul.f32 %v30, %v95
  %v102 = vmul.f32 %v31, %v95
  %v103 = vmul.f32 %v32, %v95
  %v104 = vmul.f32 %v33, %v95
  %v105 = vmul.f32 %v34, %v95
  %v106 = vmul.f32 %v35, %v95
  %v107 = vmul.f32 %v36, %v95
  %v108 = vmul.f32 %v37, %v95
  %v109 = vmul.f32 %v38, %v95
  %v110 = vmul.f32 %v39, %v95
  %v111 = vmul.f32 %v40, %v95
  %v112 = vmul.f32 %v41, %v95
  %v113 = vmul.f32 %v42, %v95
  %v114 = vmul.f32 %v43, %v95
  %v115 = vmul.f32 %v44, %v95
  %v116 = vmul.f32 %v45, %v95
  %v117 = vmul.f32 %v46, %v95
  %v118 = vmul.f32 %v47, %v95
  %v119 = vmul.f32 %v48, %v95
  %v120 = vmul.f32 %v49, %v95
  %v121 = vmul.f32 %v50, %v95
  %v122 = vmul.f32 %v51, %v95
  %v123 = vmul.f32 %v52, %v95
  %v124 = vmul.f32 %v53, %v95
  %v125 = vmul.f32 %v54, %v95
  %v126 = vmul.f32 %v55, %v95
  %v127 = vmul.f32 %v56, %v95
  %v128 = vmul.f32 %v57, %v95
  %v129 = vmul.f32 %v58, %v95
  %v130 = vmul.f32 %v59, %v95
  %v131 = vmul.f32 %v60, %v95
  %v132 = vmul.f32 %v61, %v95
  %v133 = vmul.f32 %v62, %v95
  %v134 = vmul.f32 %v63, %v95
  %v135 = vmul.f32 %v64, %v95
  %v136 = vmul.f32 %v65, %v95
  %v137 = vmul.f32 %v66, %v95
  %v138 = vmul.f32 %v67, %v95
  %v139 = vmul.f32 %v68, %v95
  %v140 = vmul.f32 %v69, %v95
  %v141 = vmul.f32 %v70, %v95
  %v142 = vmul.f32 %v71, %v95
  %v143 = vmul.f32 %v72, %v95
  %v144 = vmul.f32 %v73, %v95
  %v145 = vmul.f32 %v74, %v95
  %v146 = vmul.f32 %v75, %v95
  %v147 = vmul.f32 %v76, %v95
  %v148 = vmul.f32 %v77, %v95
  %v149 = vmul.f32 %v78, %v95
  %v150 = vmul.f32 %v79, %v95
  %v151 = vmul.f32 %v80, %v95
  %v152 = vmul.f32 %v81, %v95
  %v153 = vmul.f32 %v82, %v95
  %v154 = vmul.f32 %v83, %v95
  %v155 = vmul.f32 %v84, %v95
  %v156 = vmul.f32 %v85, %v95
  %v157 = vmul.f32 %v86, %v95
  %v158 = vmul.f32 %v87, %v95
  %v159 = vmul.f32 %v88, %v95
  %v160 = vmul.f32 %v89, %v95
  %v161 = vld [vmem:[%s2] sm:$0x1]
  %v163 = vlaneseq
  %v164 = vshrl.u32 %v163, 7
  %v165 = vsub.s32 0, %v164
  %v166 = vrot.slane %v161, %v165
  %v168 = vadd.f32 %v97, %v166
  %v169 = vadd.f32 %v98, %v166
  %v170 = vadd.f32 %v99, %v166
  %v171 = vadd.f32 %v100, %v166
  %v172 = vadd.f32 %v101, %v166
  %v173 = vadd.f32 %v102, %v166
  %v174 = vadd.f32 %v103, %v166
  %v175 = vadd.f32 %v104, %v166
  %v176 = vadd.f32 %v105, %v166
  %v177 = vadd.f32 %v106, %v166
  %v178 = vadd.f32 %v107, %v166
  %v179 = vadd.f32 %v108, %v166
  %v180 = vadd.f32 %v109, %v166
  %v181 = vadd.f32 %v110, %v166
  %v182 = vadd.f32 %v111, %v166
  %v183 = vadd.f32 %v112, %v166
  %v184 = vadd.f32 %v113, %v166
  %v185 = vadd.f32 %v114, %v166
  %v186 = vadd.f32 %v115, %v166
  %v187 = vadd.f32 %v116, %v166
  %v188 = vadd.f32 %v117, %v166
  %v189 = vadd.f32 %v118, %v166
  %v190 = vadd.f32 %v119, %v166
  %v191 = vadd.f32 %v120, %v166
  %v192 = vadd.f32 %v121, %v166
  %v193 = vadd.f32 %v122, %v166
  %v194 = vadd.f32 %v123, %v166
  %v195 = vadd.f32 %v124, %v166
  %v196 = vadd.f32 %v125, %v166
  %v197 = vadd.f32 %v126, %v166
  %v198 = vadd.f32 %v127, %v166
  %v199 = vadd.f32 %v128, %v166
  %v200 = vadd.f32 %v129, %v166
  %v201 = vadd.f32 %v130, %v166
  %v202 = vadd.f32 %v131, %v166
  %v203 = vadd.f32 %v132, %v166
  %v204 = vadd.f32 %v133, %v166
  %v205 = vadd.f32 %v134, %v166
  %v206 = vadd.f32 %v135, %v166
  %v207 = vadd.f32 %v136, %v166
  %v208 = vadd.f32 %v137, %v166
  %v209 = vadd.f32 %v138, %v166
  %v210 = vadd.f32 %v139, %v166
  %v211 = vadd.f32 %v140, %v166
  %v212 = vadd.f32 %v141, %v166
  %v213 = vadd.f32 %v142, %v166
  %v214 = vadd.f32 %v143, %v166
  %v215 = vadd.f32 %v144, %v166
  %v216 = vadd.f32 %v145, %v166
  %v217 = vadd.f32 %v146, %v166
  %v218 = vadd.f32 %v147, %v166
  %v219 = vadd.f32 %v148, %v166
  %v220 = vadd.f32 %v149, %v166
  %v221 = vadd.f32 %v150, %v166
  %v222 = vadd.f32 %v151, %v166
  %v223 = vadd.f32 %v152, %v166
  %v224 = vadd.f32 %v153, %v166
  %v225 = vadd.f32 %v154, %v166
  %v226 = vadd.f32 %v155, %v166
  %v227 = vadd.f32 %v156, %v166
  %v228 = vadd.f32 %v157, %v166
  %v229 = vadd.f32 %v158, %v166
  %v230 = vadd.f32 %v159, %v166
  %v231 = vadd.f32 %v160, %v166
  %v232 = vmax.f32 %v168, 0.0
  %v233 = vmax.f32 %v169, 0.0
  %v234 = vmax.f32 %v170, 0.0
  %v235 = vmax.f32 %v171, 0.0
  %v236 = vmax.f32 %v172, 0.0
  %v237 = vmax.f32 %v173, 0.0
  %v238 = vmax.f32 %v174, 0.0
  %v239 = vmax.f32 %v175, 0.0
  %v240 = vmax.f32 %v176, 0.0
  %v241 = vmax.f32 %v177, 0.0
  %v242 = vmax.f32 %v178, 0.0
  %v243 = vmax.f32 %v179, 0.0
  %v244 = vmax.f32 %v180, 0.0
  %v245 = vmax.f32 %v181, 0.0
  %v246 = vmax.f32 %v182, 0.0
  %v247 = vmax.f32 %v183, 0.0
  %v248 = vmax.f32 %v184, 0.0
  %v249 = vmax.f32 %v185, 0.0
  %v250 = vmax.f32 %v186, 0.0
  %v251 = vmax.f32 %v187, 0.0
  %v252 = vmax.f32 %v188, 0.0
  %v253 = vmax.f32 %v189, 0.0
  %v254 = vmax.f32 %v190, 0.0
  %v255 = vmax.f32 %v191, 0.0
  %v256 = vmax.f32 %v192, 0.0
  %v257 = vmax.f32 %v193, 0.0
  %v258 = vmax.f32 %v194, 0.0
  %v259 = vmax.f32 %v195, 0.0
  %v260 = vmax.f32 %v196, 0.0
  %v261 = vmax.f32 %v197, 0.0
  %v262 = vmax.f32 %v198, 0.0
  %v263 = vmax.f32 %v199, 0.0
  %v264 = vmax.f32 %v200, 0.0
  %v265 = vmax.f32 %v201, 0.0
  %v266 = vmax.f32 %v202, 0.0
  %v267 = vmax.f32 %v203, 0.0
  %v268 = vmax.f32 %v204, 0.0
  %v269 = vmax.f32 %v205, 0.0
  %v270 = vmax.f32 %v206, 0.0
  %v271 = vmax.f32 %v207, 0.0
  %v272 = vmax.f32 %v208, 0.0
  %v273 = vmax.f32 %v209, 0.0
  %v274 = vmax.f32 %v210, 0.0
  %v275 = vmax.f32 %v211, 0.0
  %v276 = vmax.f32 %v212, 0.0
  %v277 = vmax.f32 %v213, 0.0
  %v278 = vmax.f32 %v214, 0.0
  %v279 = vmax.f32 %v215, 0.0
  %v280 = vmax.f32 %v216, 0.0
  %v281 = vmax.f32 %v217, 0.0
  %v282 = vmax.f32 %v218, 0.0
  %v283 = vmax.f32 %v219, 0.0
  %v284 = vmax.f32 %v220, 0.0
  %v285 = vmax.f32 %v221, 0.0
  %v286 = vmax.f32 %v222, 0.0
  %v287 = vmax.f32 %v223, 0.0
  %v288 = vmax.f32 %v224, 0.0
  %v289 = vmax.f32 %v225, 0.0
  %v290 = vmax.f32 %v226, 0.0
  %v291 = vmax.f32 %v227, 0.0
  %v292 = vmax.f32 %v228, 0.0
  %v293 = vmax.f32 %v229, 0.0
  %v294 = vmax.f32 %v230, 0.0
  %v295 = vmax.f32 %v231, 0.0
  %v296 = vld [vmem:[%s3] sm:$0xff]
  %v297 = vld [vmem:[%s3 + $0x8] sm:$0xff]
  %v298 = vld [vmem:[%s3 + $0x10] sm:$0xff]
  %v299 = vld [vmem:[%s3 + $0x18] sm:$0xff]
  %v300 = vld [vmem:[%s3 + $0x20] sm:$0xff]
  %v301 = vld [vmem:[%s3 + $0x28] sm:$0xff]
  %v302 = vld [vmem:[%s3 + $0x30] sm:$0xff]
  %v303 = vld [vmem:[%s3 + $0x38] sm:$0xff]
  %v304 = vld [vmem:[%s3 + $0x40] sm:$0xff]
  %v305 = vld [vmem:[%s3 + $0x48] sm:$0xff]
  %v306 = vld [vmem:[%s3 + $0x50] sm:$0xff]
  %v307 = vld [vmem:[%s3 + $0x58] sm:$0xff]
  %v308 = vld [vmem:[%s3 + $0x60] sm:$0xff]
  %v309 = vld [vmem:[%s3 + $0x68] sm:$0xff]
  %v310 = vld [vmem:[%s3 + $0x70] sm:$0xff]
  %v311 = vld [vmem:[%s3 + $0x78] sm:$0xff]
  %312 = vmatprep.subr.mxu0 0.0
  %313 = vmatpush1.msra.mxu0 %v311
  %314 = vmatprep.subr.mxu0 0.0
  %315 = vmatpush1.msra.mxu0 %v310
  %316 = vmatprep.subr.mxu0 0.0
  %317 = vmatpush1.msra.mxu0 %v309
  %318 = vmatprep.subr.mxu0 0.0
  %319 = vmatpush1.msra.mxu0 %v308
  %320 = vmatprep.subr.mxu0 0.0
  %321 = vmatpush1.msra.mxu0 %v307
  %322 = vmatprep.subr.mxu0 0.0
  %323 = vmatpush1.msra.mxu0 %v306
  %324 = vmatprep.subr.mxu0 0.0
  %325 = vmatpush1.msra.mxu0 %v305
  %326 = vmatprep.subr.mxu0 0.0
  %327 = vmatpush1.msra.mxu0 %v304
  %328 = vmatprep.subr.mxu0 0.0
  %329 = vmatpush1.msra.mxu0 %v303
  %330 = vmatprep.subr.mxu0 0.0
  %331 = vmatpush1.msra.mxu0 %v302
  %332 = vmatprep.subr.mxu0 0.0
  %333 = vmatpush1.msra.mxu0 %v301
  %334 = vmatprep.subr.mxu0 0.0
  %335 = vmatpush1.msra.mxu0 %v300
  %336 = vmatprep.subr.mxu0 0.0
  %337 = vmatpush1.msra.mxu0 %v299
  %338 = vmatprep.subr.mxu0 0.0
  %339 = vmatpush1.msra.mxu0 %v298
  %340 = vmatprep.subr.mxu0 0.0
  %341 = vmatpush1.msra.mxu0 %v297
  %342 = vmatprep.subr.mxu0 0.0
  %343 = vmatpush1.msra.mxu0 %v296
  %344 = vmatprep.subr.mxu0 0.0
  %345 = vmatpush2.msra.mxu0 0.0
  %346 = vmatprep.subr.mxu0 0.0
  %347 = vmatpush2.msra.mxu0 0.0
  %348 = vmatprep.subr.mxu0 0.0
  %349 = vmatpush2.msra.mxu0 0.0
  %350 = vmatprep.subr.mxu0 0.0
  %351 = vmatpush2.msra.mxu0 0.0
  %352 = vmatprep.subr.mxu0 0.0
  %353 = vmatpush2.msra.mxu0 0.0
  %354 = vmatprep.subr.mxu0 0.0
  %355 = vmatpush2.msra.mxu0 0.0
  %356 = vmatprep.subr.mxu0 0.0
  %357 = vmatpush2.msra.mxu0 0.0
  %358 = vmatprep.subr.mxu0 0.0
  %359 = vmatpush2.msra.mxu0 0.0
  %360 = vmatprep.subr.mxu0 0.0
  %361 = vmatpush2.msra.mxu0 0.0
  %362 = vmatprep.subr.mxu0 0.0
  %363 = vmatpush2.msra.mxu0 0.0
  %364 = vmatprep.subr.mxu0 0.0
  %365 = vmatpush2.msra.mxu0 0.0
  %366 = vmatprep.subr.mxu0 0.0
  %367 = vmatpush2.msra.mxu0 0.0
  %368 = vmatprep.subr.mxu0 0.0
  %369 = vmatpush2.msra.mxu0 0.0
  %370 = vmatprep.subr.mxu0 0.0
  %371 = vmatpush2.msra.mxu0 0.0
  %372 = vmatprep.subr.mxu0 0.0
  %373 = vmatpush2.msra.mxu0 0.0
  %374 = vmatprep.subr.mxu0 0.0
  %375 = vmatpush2.msra.mxu0 0.0
  %376 = vmatprep.mubr.f32.mxu0 0.0
  %377 = vmatmul.mubr.f32.gmra.mxu0 %v232
  %v378 = vpop.f32.mrf.mxu0
  %v379 = vadd.f32 0.0, %v378
  %v380 = vpop.f32.mrf.mxu0
  %381 = vmatprep.mubr.f32.mxu0 0.0
  %382 = vmatmul.mubr.f32.gmra.mxu0 %v233
  %v383 = vpop.f32.mrf.mxu0
  %v384 = vadd.f32 0.0, %v383
  %v385 = vpop.f32.mrf.mxu0
  %386 = vmatprep.mubr.f32.mxu0 0.0
  %387 = vmatmul.mubr.f32.gmra.mxu0 %v234
  %v388 = vpop.f32.mrf.mxu0
  %v389 = vadd.f32 0.0, %v388
  %v390 = vpop.f32.mrf.mxu0
  %391 = vmatprep.mubr.f32.mxu0 0.0
  %392 = vmatmul.mubr.f32.gmra.mxu0 %v235
  %v393 = vpop.f32.mrf.mxu0
  %v394 = vadd.f32 0.0, %v393
  %v395 = vpop.f32.mrf.mxu0
  %396 = vmatprep.mubr.f32.mxu0 0.0
  %397 = vmatmul.mubr.f32.gmra.mxu0 %v236
  %v398 = vpop.f32.mrf.mxu0
  %v399 = vadd.f32 0.0, %v398
  %v400 = vpop.f32.mrf.mxu0
  %401 = vmatprep.mubr.f32.mxu0 0.0
  %402 = vmatmul.mubr.f32.gmra.mxu0 %v237
  %v403 = vpop.f32.mrf.mxu0
  %v404 = vadd.f32 0.0, %v403
  %v405 = vpop.f32.mrf.mxu0
  %406 = vmatprep.mubr.f32.mxu0 0.0
  %407 = vmatmul.mubr.f32.gmra.mxu0 %v238
  %v408 = vpop.f32.mrf.mxu0
  %v409 = vadd.f32 0.0, %v408
  %v410 = vpop.f32.mrf.mxu0
  %411 = vmatprep.mubr.f32.mxu0 0.0
  %412 = vmatmul.mubr.f32.gmra.mxu0 %v239
  %v413 = vpop.f32.mrf.mxu0
  %v414 = vadd.f32 0.0, %v413
  %v415 = vpop.f32.mrf.mxu0
  %416 = vmatprep.mubr.f32.mxu0 0.0
  %417 = vmatmul.mubr.f32.gmra.mxu0 %v240
  %v418 = vpop.f32.mrf.mxu0
  %v419 = vadd.f32 0.0, %v418
  %v420 = vpop.f32.mrf.mxu0
  %421 = vmatprep.mubr.f32.mxu0 0.0
  %422 = vmatmul.mubr.f32.gmra.mxu0 %v241
  %v423 = vpop.f32.mrf.mxu0
  %v424 = vadd.f32 0.0, %v423
  %v425 = vpop.f32.mrf.mxu0
  %426 = vmatprep.mubr.f32.mxu0 0.0
  %427 = vmatmul.mubr.f32.gmra.mxu0 %v242
  %v428 = vpop.f32.mrf.mxu0
  %v429 = vadd.f32 0.0, %v428
  %v430 = vpop.f32.mrf.mxu0
  %431 = vmatprep.mubr.f32.mxu0 0.0
  %432 = vmatmul.mubr.f32.gmra.mxu0 %v243
  %v433 = vpop.f32.mrf.mxu0
  %v434 = vadd.f32 0.0, %v433
  %v435 = vpop.f32.mrf.mxu0
  %436 = vmatprep.mubr.f32.mxu0 0.0
  %437 = vmatmul.mubr.f32.gmra.mxu0 %v244
  %v438 = vpop.f32.mrf.mxu0
  %v439 = vadd.f32 0.0, %v438
  %v440 = vpop.f32.mrf.mxu0
  %441 = vmatprep.mubr.f32.mxu0 0.0
  %442 = vmatmul.mubr.f32.gmra.mxu0 %v245
  %v443 = vpop.f32.mrf.mxu0
  %v444 = vadd.f32 0.0, %v443
  %v445 = vpop.f32.mrf.mxu0
  %446 = vmatprep.mubr.f32.mxu0 0.0
  %447 = vmatmul.mubr.f32.gmra.mxu0 %v246
  %v448 = vpop.f32.mrf.mxu0
  %v449 = vadd.f32 0.0, %v448
  %v450 = vpop.f32.mrf.mxu0
  %451 = vmatprep.mubr.f32.mxu0 0.0
  %452 = vmatmul.mubr.f32.gmra.mxu0 %v247
  %v453 = vpop.f32.mrf.mxu0
  %v454 = vadd.f32 0.0, %v453
  %v455 = vpop.f32.mrf.mxu0
  %456 = vmatprep.mubr.f32.mxu0 0.0
  %457 = vmatmul.mubr.f32.gmra.mxu0 %v248
  %v458 = vpop.f32.mrf.mxu0
  %v459 = vadd.f32 0.0, %v458
  %v460 = vpop.f32.mrf.mxu0
  %461 = vmatprep.mubr.f32.mxu0 0.0
  %462 = vmatmul.mubr.f32.gmra.mxu0 %v249
  %v463 = vpop.f32.mrf.mxu0
  %v464 = vadd.f32 0.0, %v463
  %v465 = vpop.f32.mrf.mxu0
  %466 = vmatprep.mubr.f32.mxu0 0.0
  %467 = vmatmul.mubr.f32.gmra.mxu0 %v250
  %v468 = vpop.f32.mrf.mxu0
  %v469 = vadd.f32 0.0, %v468
  %v470 = vpop.f32.mrf.mxu0
  %471 = vmatprep.mubr.f32.mxu0 0.0
  %472 = vmatmul.mubr.f32.gmra.mxu0 %v251
  %v473 = vpop.f32.mrf.mxu0
  %v474 = vadd.f32 0.0, %v473
  %v475 = vpop.f32.mrf.mxu0
  %476 = vmatprep.mubr.f32.mxu0 0.0
  %477 = vmatmul.mubr.f32.gmra.mxu0 %v252
  %v478 = vpop.f32.mrf.mxu0
  %v479 = vadd.f32 0.0, %v478
  %v480 = vpop.f32.mrf.mxu0
  %481 = vmatprep.mubr.f32.mxu0 0.0
  %482 = vmatmul.mubr.f32.gmra.mxu0 %v253
  %v483 = vpop.f32.mrf.mxu0
  %v484 = vadd.f32 0.0, %v483
  %v485 = vpop.f32.mrf.mxu0
  %486 = vmatprep.mubr.f32.mxu0 0.0
  %487 = vmatmul.mubr.f32.gmra.mxu0 %v254
  %v488 = vpop.f32.mrf.mxu0
  %v489 = vadd.f32 0.0, %v488
  %v490 = vpop.f32.mrf.mxu0
  %491 = vmatprep.mubr.f32.mxu0 0.0
  %492 = vmatmul.mubr.f32.gmra.mxu0 %v255
  %v493 = vpop.f32.mrf.mxu0
  %v494 = vadd.f32 0.0, %v493
  %v495 = vpop.f32.mrf.mxu0
  %496 = vmatprep.mubr.f32.mxu0 0.0
  %497 = vmatmul.mubr.f32.gmra.mxu0 %v256
  %v498 = vpop.f32.mrf.mxu0
  %v499 = vadd.f32 0.0, %v498
  %v500 = vpop.f32.mrf.mxu0
  %501 = vmatprep.mubr.f32.mxu0 0.0
  %502 = vmatmul.mubr.f32.gmra.mxu0 %v257
  %v503 = vpop.f32.mrf.mxu0
  %v504 = vadd.f32 0.0, %v503
  %v505 = vpop.f32.mrf.mxu0
  %506 = vmatprep.mubr.f32.mxu0 0.0
  %507 = vmatmul.mubr.f32.gmra.mxu0 %v258
  %v508 = vpop.f32.mrf.mxu0
  %v509 = vadd.f32 0.0, %v508
  %v510 = vpop.f32.mrf.mxu0
  %511 = vmatprep.mubr.f32.mxu0 0.0
  %512 = vmatmul.mubr.f32.gmra.mxu0 %v259
  %v513 = vpop.f32.mrf.mxu0
  %v514 = vadd.f32 0.0, %v513
  %v515 = vpop.f32.mrf.mxu0
  %516 = vmatprep.mubr.f32.mxu0 0.0
  %517 = vmatmul.mubr.f32.gmra.mxu0 %v260
  %v518 = vpop.f32.mrf.mxu0
  %v519 = vadd.f32 0.0, %v518
  %v520 = vpop.f32.mrf.mxu0
  %521 = vmatprep.mubr.f32.mxu0 0.0
  %522 = vmatmul.mubr.f32.gmra.mxu0 %v261
  %v523 = vpop.f32.mrf.mxu0
  %v524 = vadd.f32 0.0, %v523
  %v525 = vpop.f32.mrf.mxu0
  %526 = vmatprep.mubr.f32.mxu0 0.0
  %527 = vmatmul.mubr.f32.gmra.mxu0 %v262
  %v528 = vpop.f32.mrf.mxu0
  %v529 = vadd.f32 0.0, %v528
  %v530 = vpop.f32.mrf.mxu0
  %531 = vmatprep.mubr.f32.mxu0 0.0
  %532 = vmatmul.mubr.f32.gmra.mxu0 %v263
  %v533 = vpop.f32.mrf.mxu0
  %v534 = vadd.f32 0.0, %v533
  %v535 = vpop.f32.mrf.mxu0
  %536 = vmatprep.mubr.f32.mxu0 0.0
  %537 = vmatmul.mubr.f32.gmra.mxu0 %v264
  %v538 = vpop.f32.mrf.mxu0
  %v539 = vadd.f32 0.0, %v538
  %v540 = vpop.f32.mrf.mxu0
  %541 = vmatprep.mubr.f32.mxu0 0.0
  %542 = vmatmul.mubr.f32.gmra.mxu0 %v265
  %v543 = vpop.f32.mrf.mxu0
  %v544 = vadd.f32 0.0, %v543
  %v545 = vpop.f32.mrf.mxu0
  %546 = vmatprep.mubr.f32.mxu0 0.0
  %547 = vmatmul.mubr.f32.gmra.mxu0 %v266
  %v548 = vpop.f32.mrf.mxu0
  %v549 = vadd.f32 0.0, %v548
  %v550 = vpop.f32.mrf.mxu0
  %551 = vmatprep.mubr.f32.mxu0 0.0
  %552 = vmatmul.mubr.f32.gmra.mxu0 %v267
  %v553 = vpop.f32.mrf.mxu0
  %v554 = vadd.f32 0.0, %v553
  %v555 = vpop.f32.mrf.mxu0
  %556 = vmatprep.mubr.f32.mxu0 0.0
  %557 = vmatmul.mubr.f32.gmra.mxu0 %v268
  %v558 = vpop.f32.mrf.mxu0
  %v559 = vadd.f32 0.0, %v558
  %v560 = vpop.f32.mrf.mxu0
  %561 = vmatprep.mubr.f32.mxu0 0.0
  %562 = vmatmul.mubr.f32.gmra.mxu0 %v269
  %v563 = vpop.f32.mrf.mxu0
  %v564 = vadd.f32 0.0, %v563
  %v565 = vpop.f32.mrf.mxu0
  %566 = vmatprep.mubr.f32.mxu0 0.0
  %567 = vmatmul.mubr.f32.gmra.mxu0 %v270
  %v568 = vpop.f32.mrf.mxu0
  %v569 = vadd.f32 0.0, %v568
  %v570 = vpop.f32.mrf.mxu0
  %571 = vmatprep.mubr.f32.mxu0 0.0
  %572 = vmatmul.mubr.f32.gmra.mxu0 %v271
  %v573 = vpop.f32.mrf.mxu0
  %v574 = vadd.f32 0.0, %v573
  %v575 = vpop.f32.mrf.mxu0
  %576 = vmatprep.mubr.f32.mxu0 0.0
  %577 = vmatmul.mubr.f32.gmra.mxu0 %v272
  %v578 = vpop.f32.mrf.mxu0
  %v579 = vadd.f32 0.0, %v578
  %v580 = vpop.f32.mrf.mxu0
  %581 = vmatprep.mubr.f32.mxu0 0.0
  %582 = vmatmul.mubr.f32.gmra.mxu0 %v273
  %v583 = vpop.f32.mrf.mxu0
  %v584 = vadd.f32 0.0, %v583
  %v585 = vpop.f32.mrf.mxu0
  %586 = vmatprep.mubr.f32.mxu0 0.0
  %587 = vmatmul.mubr.f32.gmra.mxu0 %v274
  %v588 = vpop.f32.mrf.mxu0
  %v589 = vadd.f32 0.0, %v588
  %v590 = vpop.f32.mrf.mxu0
  %591 = vmatprep.mubr.f32.mxu0 0.0
  %592 = vmatmul.mubr.f32.gmra.mxu0 %v275
  %v593 = vpop.f32.mrf.mxu0
  %v594 = vadd.f32 0.0, %v593
  %v595 = vpop.f32.mrf.mxu0
  %596 = vmatprep.mubr.f32.mxu0 0.0
  %597 = vmatmul.mubr.f32.gmra.mxu0 %v276
  %v598 = vpop.f32.mrf.mxu0
  %v599 = vadd.f32 0.0, %v598
  %v600 = vpop.f32.mrf.mxu0
  %601 = vmatprep.mubr.f32.mxu0 0.0
  %602 = vmatmul.mubr.f32.gmra.mxu0 %v277
  %v603 = vpop.f32.mrf.mxu0
  %v604 = vadd.f32 0.0, %v603
  %v605 = vpop.f32.mrf.mxu0
  %606 = vmatprep.mubr.f32.mxu0 0.0
  %607 = vmatmul.mubr.f32.gmra.mxu0 %v278
  %v608 = vpop.f32.mrf.mxu0
  %v609 = vadd.f32 0.0, %v608
  %v610 = vpop.f32.mrf.mxu0
  %611 = vmatprep.mubr.f32.mxu0 0.0
  %612 = vmatmul.mubr.f32.gmra.mxu0 %v279
  %v613 = vpop.f32.mrf.mxu0
  %v614 = vadd.f32 0.0, %v613
  %v615 = vpop.f32.mrf.mxu0
  %616 = vmatprep.mubr.f32.mxu0 0.0
  %617 = vmatmul.mubr.f32.gmra.mxu0 %v280
  %v618 = vpop.f32.mrf.mxu0
  %v619 = vadd.f32 0.0, %v618
  %v620 = vpop.f32.mrf.mxu0
  %621 = vmatprep.mubr.f32.mxu0 0.0
  %622 = vmatmul.mubr.f32.gmra.mxu0 %v281
  %v623 = vpop.f32.mrf.mxu0
  %v624 = vadd.f32 0.0, %v623
  %v625 = vpop.f32.mrf.mxu0
  %626 = vmatprep.mubr.f32.mxu0 0.0
  %627 = vmatmul.mubr.f32.gmra.mxu0 %v282
  %v628 = vpop.f32.mrf.mxu0
  %v629 = vadd.f32 0.0, %v628
  %v630 = vpop.f32.mrf.mxu0
  %631 = vmatprep.mubr.f32.mxu0 0.0
  %632 = vmatmul.mubr.f32.gmra.mxu0 %v283
  %v633 = vpop.f32.mrf.mxu0
  %v634 = vadd.f32 0.0, %v633
  %v635 = vpop.f32.mrf.mxu0
  %636 = vmatprep.mubr.f32.mxu0 0.0
  %637 = vmatmul.mubr.f32.gmra.mxu0 %v284
  %v638 = vpop.f32.mrf.mxu0
  %v639 = vadd.f32 0.0, %v638
  %v640 = vpop.f32.mrf.mxu0
  %641 = vmatprep.mubr.f32.mxu0 0.0
  %642 = vmatmul.mubr.f32.gmra.mxu0 %v285
  %v643 = vpop.f32.mrf.mxu0
  %v644 = vadd.f32 0.0, %v643
  %v645 = vpop.f32.mrf.mxu0
  %646 = vmatprep.mubr.f32.mxu0 0.0
  %647 = vmatmul.mubr.f32.gmra.mxu0 %v286
  %v648 = vpop.f32.mrf.mxu0
  %v649 = vadd.f32 0.0, %v648
  %v650 = vpop.f32.mrf.mxu0
  %651 = vmatprep.mubr.f32.mxu0 0.0
  %652 = vmatmul.mubr.f32.gmra.mxu0 %v287
  %v653 = vpop.f32.mrf.mxu0
  %v654 = vadd.f32 0.0, %v653
  %v655 = vpop.f32.mrf.mxu0
  %656 = vmatprep.mubr.f32.mxu0 0.0
  %657 = vmatmul.mubr.f32.gmra.mxu0 %v288
  %v658 = vpop.f32.mrf.mxu0
  %v659 = vadd.f32 0.0, %v658
  %v660 = vpop.f32.mrf.mxu0
  %661 = vmatprep.mubr.f32.mxu0 0.0
  %662 = vmatmul.mubr.f32.gmra.mxu0 %v289
  %v663 = vpop.f32.mrf.mxu0
  %v664 = vadd.f32 0.0, %v663
  %v665 = vpop.f32.mrf.mxu0
  %666 = vmatprep.mubr.f32.mxu0 0.0
  %667 = vmatmul.mubr.f32.gmra.mxu0 %v290
  %v668 = vpop.f32.mrf.mxu0
  %v669 = vadd.f32 0.0, %v668
  %v670 = vpop.f32.mrf.mxu0
  %671 = vmatprep.mubr.f32.mxu0 0.0
  %672 = vmatmul.mubr.f32.gmra.mxu0 %v291
  %v673 = vpop.f32.mrf.mxu0
  %v674 = vadd.f32 0.0, %v673
  %v675 = vpop.f32.mrf.mxu0
  %676 = vmatprep.mubr.f32.mxu0 0.0
  %677 = vmatmul.mubr.f32.gmra.mxu0 %v292
  %v678 = vpop.f32.mrf.mxu0
  %v679 = vadd.f32 0.0, %v678
  %v680 = vpop.f32.mrf.mxu0
  %681 = vmatprep.mubr.f32.mxu0 0.0
  %682 = vmatmul.mubr.f32.gmra.mxu0 %v293
  %v683 = vpop.f32.mrf.mxu0
  %v684 = vadd.f32 0.0, %v683
  %v685 = vpop.f32.mrf.mxu0
  %686 = vmatprep.mubr.f32.mxu0 0.0
  %687 = vmatmul.mubr.f32.gmra.mxu0 %v294
  %v688 = vpop.f32.mrf.mxu0
  %v689 = vadd.f32 0.0, %v688
  %v690 = vpop.f32.mrf.mxu0
  %691 = vmatprep.mubr.f32.mxu0 0.0
  %692 = vmatmul.mubr.f32.gmra.mxu0 %v295
  %v693 = vpop.f32.mrf.mxu0
  %v694 = vadd.f32 0.0, %v693
  %v695 = vpop.f32.mrf.mxu0
  %696 = vdwg.mxu0
  %697 = vst [vmem:[%s4] sm:$0xff] %v379
  %698 = vst [vmem:[%s4 + $0x8] sm:$0xff] %v384
  %699 = vst [vmem:[%s4 + $0x10] sm:$0xff] %v389
  %700 = vst [vmem:[%s4 + $0x18] sm:$0xff] %v394
  %701 = vst [vmem:[%s4 + $0x20] sm:$0xff] %v399
  %702 = vst [vmem:[%s4 + $0x28] sm:$0xff] %v404
  %703 = vst [vmem:[%s4 + $0x30] sm:$0xff] %v409
  %704 = vst [vmem:[%s4 + $0x38] sm:$0xff] %v414
  %705 = vst [vmem:[%s4 + $0x40] sm:$0xff] %v419
  %706 = vst [vmem:[%s4 + $0x48] sm:$0xff] %v424
  %707 = vst [vmem:[%s4 + $0x50] sm:$0xff] %v429
  %708 = vst [vmem:[%s4 + $0x58] sm:$0xff] %v434
  %709 = vst [vmem:[%s4 + $0x60] sm:$0xff] %v439
  %710 = vst [vmem:[%s4 + $0x68] sm:$0xff] %v444
  %711 = vst [vmem:[%s4 + $0x70] sm:$0xff] %v449
  %712 = vst [vmem:[%s4 + $0x78] sm:$0xff] %v454
  %713 = vst [vmem:[%s4 + $0x80] sm:$0xff] %v459
  %714 = vst [vmem:[%s4 + $0x88] sm:$0xff] %v464
  %715 = vst [vmem:[%s4 + $0x90] sm:$0xff] %v469
  %716 = vst [vmem:[%s4 + $0x98] sm:$0xff] %v474
  %717 = vst [vmem:[%s4 + $0xa0] sm:$0xff] %v479
  %718 = vst [vmem:[%s4 + $0xa8] sm:$0xff] %v484
  %719 = vst [vmem:[%s4 + $0xb0] sm:$0xff] %v489
  %720 = vst [vmem:[%s4 + $0xb8] sm:$0xff] %v494
  %721 = vst [vmem:[%s4 + $0xc0] sm:$0xff] %v499
  %722 = vst [vmem:[%s4 + $0xc8] sm:$0xff] %v504
  %723 = vst [vmem:[%s4 + $0xd0] sm:$0xff] %v509
  %724 = vst [vmem:[%s4 + $0xd8] sm:$0xff] %v514
  %725 = vst [vmem:[%s4 + $0xe0] sm:$0xff] %v519
  %726 = vst [vmem:[%s4 + $0xe8] sm:$0xff] %v524
  %727 = vst [vmem:[%s4 + $0xf0] sm:$0xff] %v529
  %728 = vst [vmem:[%s4 + $0xf8] sm:$0xff] %v534
  %729 = vst [vmem:[%s4 + $0x100] sm:$0xff] %v539
  %730 = vst [vmem:[%s4 + $0x108] sm:$0xff] %v544
  %731 = vst [vmem:[%s4 + $0x110] sm:$0xff] %v549
  %732 = vst [vmem:[%s4 + $0x118] sm:$0xff] %v554
  %733 = vst [vmem:[%s4 + $0x120] sm:$0xff] %v559
  %734 = vst [vmem:[%s4 + $0x128] sm:$0xff] %v564
  %735 = vst [vmem:[%s4 + $0x130] sm:$0xff] %v569
  %736 = vst [vmem:[%s4 + $0x138] sm:$0xff] %v574
  %737 = vst [vmem:[%s4 + $0x140] sm:$0xff] %v579
  %738 = vst [vmem:[%s4 + $0x148] sm:$0xff] %v584
  %739 = vst [vmem:[%s4 + $0x150] sm:$0xff] %v589
  %740 = vst [vmem:[%s4 + $0x158] sm:$0xff] %v594
  %741 = vst [vmem:[%s4 + $0x160] sm:$0xff] %v599
  %742 = vst [vmem:[%s4 + $0x168] sm:$0xff] %v604
  %743 = vst [vmem:[%s4 + $0x170] sm:$0xff] %v609
  %744 = vst [vmem:[%s4 + $0x178] sm:$0xff] %v614
  %745 = vst [vmem:[%s4 + $0x180] sm:$0xff] %v619
  %746 = vst [vmem:[%s4 + $0x188] sm:$0xff] %v624
  %747 = vst [vmem:[%s4 + $0x190] sm:$0xff] %v629
  %748 = vst [vmem:[%s4 + $0x198] sm:$0xff] %v634
  %749 = vst [vmem:[%s4 + $0x1a0] sm:$0xff] %v639
  %750 = vst [vmem:[%s4 + $0x1a8] sm:$0xff] %v644
  %751 = vst [vmem:[%s4 + $0x1b0] sm:$0xff] %v649
  %752 = vst [vmem:[%s4 + $0x1b8] sm:$0xff] %v654
  %753 = vst [vmem:[%s4 + $0x1c0] sm:$0xff] %v659
  %754 = vst [vmem:[%s4 + $0x1c8] sm:$0xff] %v664
  %755 = vst [vmem:[%s4 + $0x1d0] sm:$0xff] %v669
  %756 = vst [vmem:[%s4 + $0x1d8] sm:$0xff] %v674
  %757 = vst [vmem:[%s4 + $0x1e0] sm:$0xff] %v679
  %758 = vst [vmem:[%s4 + $0x1e8] sm:$0xff] %v684
  %759 = vst [vmem:[%s4 + $0x1f0] sm:$0xff] %v689
  %760 = vst [vmem:[%s4 + $0x1f8] sm:$0xff] %v694
  %v761 = vld [vmem:[%s5] sm:$0x1]
  %v762 = vadd.f32 %v379, %v384
  %v763 = vadd.f32 %v762, %v389
  %v764 = vadd.f32 %v763, %v394
  %v765 = vadd.f32 %v764, %v399
  %v766 = vadd.f32 %v765, %v404
  %v767 = vadd.f32 %v766, %v409
  %v768 = vadd.f32 %v767, %v414
  %v769 = vadd.f32 %v768, %v419
  %v770 = vadd.f32 %v769, %v424
  %v771 = vadd.f32 %v770, %v429
  %v772 = vadd.f32 %v771, %v434
  %v773 = vadd.f32 %v772, %v439
  %v774 = vadd.f32 %v773, %v444
  %v775 = vadd.f32 %v774, %v449
  %v776 = vadd.f32 %v775, %v454
  %v777 = vadd.f32 %v776, %v459
  %v778 = vadd.f32 %v777, %v464
  %v779 = vadd.f32 %v778, %v469
  %v780 = vadd.f32 %v779, %v474
  %v781 = vadd.f32 %v780, %v479
  %v782 = vadd.f32 %v781, %v484
  %v783 = vadd.f32 %v782, %v489
  %v784 = vadd.f32 %v783, %v494
  %v785 = vadd.f32 %v784, %v499
  %v786 = vadd.f32 %v785, %v504
  %v787 = vadd.f32 %v786, %v509
  %v788 = vadd.f32 %v787, %v514
  %v789 = vadd.f32 %v788, %v519
  %v790 = vadd.f32 %v789, %v524
  %v791 = vadd.f32 %v790, %v529
  %v792 = vadd.f32 %v791, %v534
  %v793 = vadd.f32 %v792, %v539
  %v794 = vadd.f32 %v793, %v544
  %v795 = vadd.f32 %v794, %v549
  %v796 = vadd.f32 %v795, %v554
  %v797 = vadd.f32 %v796, %v559
  %v798 = vadd.f32 %v797, %v564
  %v799 = vadd.f32 %v798, %v569
  %v800 = vadd.f32 %v799, %v574
  %v801 = vadd.f32 %v800, %v579
  %v802 = vadd.f32 %v801, %v584
  %v803 = vadd.f32 %v802, %v589
  %v804 = vadd.f32 %v803, %v594
  %v805 = vadd.f32 %v804, %v599
  %v806 = vadd.f32 %v805, %v604
  %v807 = vadd.f32 %v806, %v609
  %v808 = vadd.f32 %v807, %v614
  %v809 = vadd.f32 %v808, %v619
  %v810 = vadd.f32 %v809, %v624
  %v811 = vadd.f32 %v810, %v629
  %v812 = vadd.f32 %v811, %v634
  %v813 = vadd.f32 %v812, %v639
  %v814 = vadd.f32 %v813, %v644
  %v815 = vadd.f32 %v814, %v649
  %v816 = vadd.f32 %v815, %v654
  %v817 = vadd.f32 %v816, %v659
  %v818 = vadd.f32 %v817, %v664
  %v819 = vadd.f32 %v818, %v669
  %v820 = vadd.f32 %v819, %v674
  %v821 = vadd.f32 %v820, %v679
  %v822 = vadd.f32 %v821, %v684
  %v823 = vadd.f32 %v822, %v689
  %v824 = vadd.f32 %v823, %v694
  %v825 = vrot.slane %v824, 4
  %v826 = vadd.f32 %v824, %v825
  %v827 = vrot.slane %v826, 2
  %v828 = vadd.f32 %v826, %v827
  %v829 = vrot.slane %v828, 1
  %v830 = vadd.f32 %v828, %v829
  %v831 = vadd.f32 %v761, %v830
  %832 = vst [vmem:[%s5] sm:$0x1] %v831
  %v833 = vld [vmem:[%s6] sm:$0x1]
  %v834 = vmul.f32 %v379, %v379
  %v835 = vmul.f32 %v384, %v384
  %v836 = vmul.f32 %v389, %v389
  %v837 = vmul.f32 %v394, %v394
  %v838 = vmul.f32 %v399, %v399
  %v839 = vmul.f32 %v404, %v404
  %v840 = vmul.f32 %v409, %v409
  %v841 = vmul.f32 %v414, %v414
  %v842 = vmul.f32 %v419, %v419
  %v843 = vmul.f32 %v424, %v424
  %v844 = vmul.f32 %v429, %v429
  %v845 = vmul.f32 %v434, %v434
  %v846 = vmul.f32 %v439, %v439
  %v847 = vmul.f32 %v444, %v444
  %v848 = vmul.f32 %v449, %v449
  %v849 = vmul.f32 %v454, %v454
  %v850 = vmul.f32 %v459, %v459
  %v851 = vmul.f32 %v464, %v464
  %v852 = vmul.f32 %v469, %v469
  %v853 = vmul.f32 %v474, %v474
  %v854 = vmul.f32 %v479, %v479
  %v855 = vmul.f32 %v484, %v484
  %v856 = vmul.f32 %v489, %v489
  %v857 = vmul.f32 %v494, %v494
  %v858 = vmul.f32 %v499, %v499
  %v859 = vmul.f32 %v504, %v504
  %v860 = vmul.f32 %v509, %v509
  %v861 = vmul.f32 %v514, %v514
  %v862 = vmul.f32 %v519, %v519
  %v863 = vmul.f32 %v524, %v524
  %v864 = vmul.f32 %v529, %v529
  %v865 = vmul.f32 %v534, %v534
  %v866 = vmul.f32 %v539, %v539
  %v867 = vmul.f32 %v544, %v544
  %v868 = vmul.f32 %v549, %v549
  %v869 = vmul.f32 %v554, %v554
  %v870 = vmul.f32 %v559, %v559
  %v871 = vmul.f32 %v564, %v564
  %v872 = vmul.f32 %v569, %v569
  %v873 = vmul.f32 %v574, %v574
  %v874 = vmul.f32 %v579, %v579
  %v875 = vmul.f32 %v584, %v584
  %v876 = vmul.f32 %v589, %v589
  %v877 = vmul.f32 %v594, %v594
  %v878 = vmul.f32 %v599, %v599
  %v879 = vmul.f32 %v604, %v604
  %v880 = vmul.f32 %v609, %v609
  %v881 = vmul.f32 %v614, %v614
  %v882 = vmul.f32 %v619, %v619
  %v883 = vmul.f32 %v624, %v624
  %v884 = vmul.f32 %v629, %v629
  %v885 = vmul.f32 %v634, %v634
  %v886 = vmul.f32 %v639, %v639
  %v887 = vmul.f32 %v644, %v644
  %v888 = vmul.f32 %v649, %v649
  %v889 = vmul.f32 %v654, %v654
  %v890 = vmul.f32 %v659, %v659
  %v891 = vmul.f32 %v664, %v664
  %v892 = vmul.f32 %v669, %v669
  %v893 = vmul.f32 %v674, %v674
  %v894 = vmul.f32 %v679, %v679
  %v895 = vmul.f32 %v684, %v684
  %v896 = vmul.f32 %v689, %v689
  %v897 = vmul.f32 %v694, %v694
  %v898 = vadd.f32 %v834, %v835
  %v899 = vadd.f32 %v898, %v836
  %v900 = vadd.f32 %v899, %v837
  %v901 = vadd.f32 %v900, %v838
  %v902 = vadd.f32 %v901, %v839
  %v903 = vadd.f32 %v902, %v840
  %v904 = vadd.f32 %v903, %v841
  %v905 = vadd.f32 %v904, %v842
  %v906 = vadd.f32 %v905, %v843
  %v907 = vadd.f32 %v906, %v844
  %v908 = vadd.f32 %v907, %v845
  %v909 = vadd.f32 %v908, %v846
  %v910 = vadd.f32 %v909, %v847
  %v911 = vadd.f32 %v910, %v848
  %v912 = vadd.f32 %v911, %v849
  %v913 = vadd.f32 %v912, %v850
  %v914 = vadd.f32 %v913, %v851
  %v915 = vadd.f32 %v914, %v852
  %v916 = vadd.f32 %v915, %v853
  %v917 = vadd.f32 %v916, %v854
  %v918 = vadd.f32 %v917, %v855
  %v919 = vadd.f32 %v918, %v856
  %v920 = vadd.f32 %v919, %v857
  %v921 = vadd.f32 %v920, %v858
  %v922 = vadd.f32 %v921, %v859
  %v923 = vadd.f32 %v922, %v860
  %v924 = vadd.f32 %v923, %v861
  %v925 = vadd.f32 %v924, %v862
  %v926 = vadd.f32 %v925, %v863
  %v927 = vadd.f32 %v926, %v864
  %v928 = vadd.f32 %v927, %v865
  %v929 = vadd.f32 %v928, %v866
  %v930 = vadd.f32 %v929, %v867
  %v931 = vadd.f32 %v930, %v868
  %v932 = vadd.f32 %v931, %v869
  %v933 = vadd.f32 %v932, %v870
  %v934 = vadd.f32 %v933, %v871
  %v935 = vadd.f32 %v934, %v872
  %v936 = vadd.f32 %v935, %v873
  %v937 = vadd.f32 %v936, %v874
  %v938 = vadd.f32 %v937, %v875
  %v939 = vadd.f32 %v938, %v876
  %v940 = vadd.f32 %v939, %v877
  %v941 = vadd.f32 %v940, %v878
  %v942 = vadd.f32 %v941, %v879
  %v943 = vadd.f32 %v942, %v880
  %v944 = vadd.f32 %v943, %v881
  %v945 = vadd.f32 %v944, %v882
  %v946 = vadd.f32 %v945, %v883
  %v947 = vadd.f32 %v946, %v884
  %v948 = vadd.f32 %v947, %v885
  %v949 = vadd.f32 %v948, %v886
  %v950 = vadd.f32 %v949, %v887
  %v951 = vadd.f32 %v950, %v888
  %v952 = vadd.f32 %v951, %v889
  %v953 = vadd.f32 %v952, %v890
  %v954 = vadd.f32 %v953, %v891
  %v955 = vadd.f32 %v954, %v892
  %v956 = vadd.f32 %v955, %v893
  %v957 = vadd.f32 %v956, %v894
  %v958 = vadd.f32 %v957, %v895
  %v959 = vadd.f32 %v958, %v896
  %v960 = vadd.f32 %v959, %v897
  %v961 = vrot.slane %v960, 4
  %v962 = vadd.f32 %v960, %v961
  %v963 = vrot.slane %v962, 2
  %v964 = vadd.f32 %v962, %v963
  %v965 = vrot.slane %v964, 1
  %v966 = vadd.f32 %v964, %v965
  %v967 = vadd.f32 %v833, %v966
  %968 = vst [vmem:[%s6] sm:$0x1] %v967
  // Predicated region
  $region22: #{bottleneck_forward.5} parent=0 // pred_check
    _
  $region23: #{bottleneck_forward.5} parent=0 // pred_check_branch
    %970 = sbr.rel (0) target = $region25
  $region24: #{bottleneck_forward.5} parent=0 // pred_region
    _
  $region25: #{bottleneck_forward.5} parent=0 // pred_fallthru
    _
  // Predicated region
  $region26: #{bottleneck_forward.5} parent=0 // pred_check
    _
  $region27: #{bottleneck_forward.5} parent=0 // pred_check_branch
    %972 = sbr.rel (0) target = $region29
  $region28: #{bottleneck_forward.5} parent=0 // pred_region
    _
  $region29: #{bottleneck_forward.5} parent=0 // pred_fallthru
    _
  // Predicated region
  $region30: #{bottleneck_forward.5} parent=0 // pred_check
    _
  $region31: #{bottleneck_forward.5} parent=0 // pred_check_branch
    %974 = sbr.rel (0) target = $region33
  $region32: #{bottleneck_forward.5} parent=0 // pred_region
    _
  $region33: #{bottleneck_forward.5} parent=0 // pred_fallthru
    _
  // Predicated region
  $region34: #{bottleneck_forward.5} parent=0 // pred_check
    _
  $region35: #{bottleneck_forward.5} parent=0 // pred_check_branch
    %976 = sbr.rel (0) target = $region37
  $region36: #{bottleneck_forward.5} parent=0 // pred_region
    _
  $region37: #{bottleneck_forward.5} parent=0 // pred_fallthru
    _
  // Predicated region
  $region38: #{bottleneck_forward.5} parent=0 // pred_check
    _
  $region39: #{bottleneck_forward.5} parent=0 // pred_check_branch
    %978 = sbr.rel (0) target = $region41
  $region40: #{bottleneck_forward.5} parent=0 // pred_region
    _
  $region41: #{bottleneck_forward.5} parent=0 // pred_fallthru
    _
  // Predicated region
  $region42: #{bottleneck_forward.5} parent=0 // pred_check
    _
  $region43: #{bottleneck_forward.5} parent=0 // pred_check_branch
    %980 = sbr.rel (0) target = $region45
  $region44: #{bottleneck_forward.5} parent=0 // pred_region
    _
  $region45: #{bottleneck_forward.5} parent=0 // pred_fallthru
    _

</llo_original>
